<compile_context>
chip_gen: v7x
topology: tpu7x:2x2x1
jax: 0.10.0
libtpu: 0.0.40
codegen_flags: <defaults>
</compile_context>

<pallas_src>
import jax
import jax.numpy as jnp
import numpy as np
from jax.experimental import pallas as pl
from jax.experimental.pallas import tpu as pltpu


def _make_stdc_kernel(H, W, S, L):
    """S: 128-aligned left halo width; L: 128-aligned pad_scr lane count."""
    HW = H * W

    def kernel(x_ref, w1_ref, b1_ref, w2_ref, b2_ref, w3_ref, b3_ref,
               w4_ref, b4_ref, mnf_ref, mnl_ref, out_ref, pad_scr, slab_scr):
        # Zero ONLY the halo bands (left [0,S), right [S+HW,L)) each grid step.
        # The interior [S, S+HW) is fully rewritten by every conv, so the halos
        # are never dirtied; they just start uninitialised on each core.
        rows = pad_scr.shape[0]
        pad_scr[:, 0:S] = jnp.zeros((rows, S), pad_scr.dtype)
        pad_scr[:, S + HW:L] = jnp.zeros((rows, L - S - HW), pad_scr.dtype)

        def conv3x3_bn_relu(y_bf16, w_ref, b_ref):
            # y_bf16: (cin, HW) activation.
            # w_ref : (cout, 9*cin) bf16, dw-major / dh / channel-minor,
            #         BN scale folded.  b_ref: (cout, 1) f32 folded BN bias.
            cin = y_bf16.shape[0]
            # Lane-aligned, unmasked store of the activation into the padded
            # scratch (S is a multiple of 128).
            pad_scr[:cin, S:S + HW] = y_bf16

            # Hoisted (1,HW)->(cin,HW) broadcasts of the wrap masks (used by
            # the dw=0 / dw=2 tap groups only).
            mask_nf = jnp.broadcast_to(mnf_ref[...], (cin, HW))  # 0 where w == 0
            mask_nl = jnp.broadcast_to(mnl_ref[...], (cin, HW))  # 0 where w == W-1

            # Build the im2col slab in a persistent VMEM scratch: nine aligned
            # (cin, HW) stores, dw-major ordering matching the weight layout.
            for dw in range(3):
                for dh in range(3):
                    off = S + (dh - 1) * W + (dw - 1)     # lane shift of tap
                    p = pad_scr[:cin, off:off + HW]
                    if dw == 0:        # reads col w-1: invalid at w == 0
                        p = p * mask_nf
                    elif dw == 2:      # reads col w+1: invalid at w == W-1
                        p = p * mask_nl
                    r = (dw * 3 + dh) * cin
                    slab_scr[r:r + cin, :] = p

            # Single big-K MXU matmul: (cout, 9*cin) x (9*cin, HW).
            acc = jnp.dot(w_ref[...], slab_scr[0:9 * cin, :],
                          preferred_element_type=jnp.float32)
            return jnp.maximum(acc + b_ref[...], 0.0)

        # block1: 1x1 conv + BN + ReLU  ->  one matmul, K = Cin.
        x_b = x_ref[0].astype(jnp.bfloat16)                    # (Cin, HW)
        y1 = jnp.maximum(
            jnp.dot(w1_ref[...], x_b, preferred_element_type=jnp.float32)
            + b1_ref[...], 0.0)
        C1 = y1.shape[0]
        out_ref[0, 0:C1, :] = y1                               # store branch 1 now

        y2 = conv3x3_bn_relu(y1.astype(jnp.bfloat16), w2_ref, b2_ref)
        C2 = y2.shape[0]
        out_ref[0, C1:C1 + C2, :] = y2                         # store branch 2 now

        y3 = conv3x3_bn_relu(y2.astype(jnp.bfloat16), w3_ref, b3_ref)
        C3 = y3.shape[0]
        out_ref[0, C1 + C2:C1 + C2 + C3, :] = y3               # store branch 3 now

        y4 = conv3x3_bn_relu(y3.astype(jnp.bfloat16), w4_ref, b4_ref)
        C4 = y4.shape[0]
        off4 = C1 + C2 + C3
        out_ref[0, off4:off4 + C4, :] = y4                     # store branch 4

    return kernel


def _fold_bn(w_oihw, gamma, beta, mean, var, eps=1e-5):
    """Fold eval-mode BatchNorm into the bias-free conv preceding it."""
    scale = gamma / jnp.sqrt(var + eps)
    return w_oihw * scale[:, None, None, None], beta - mean * scale


def prepare_params(conv_ws, bns):
    """Produce kernel-layout params.

    conv_ws: 4 OIHW conv weights, bns: 4 (gamma, beta, mean, var) tuples.
    Returns [(wmat_bf16, bias_f32), ...]: the 1x1 conv is (C1, Cin); the 3x3
    convs are (Cout, 9*Cin) with dw-major / dh / channel-minor ordering that
    matches the in-kernel im2col slab.
    """
    out = []
    for w, bn in zip(conv_ws, bns):
        wf, b = _fold_bn(w, *bn)
        cout, cin, kh, kw = wf.shape
        if kh == 1:
            wmat = wf.reshape(cout, cin)
        else:
            # (o, i, dh, dw) -> (o, dw, dh, i): dw-major slab ordering.
            wmat = jnp.transpose(wf, (0, 3, 2, 1)).reshape(cout, kh * kw * cin)
        out.append((wmat.astype(jnp.bfloat16), b.reshape(cout, 1)))
    return out


def stdc_forward(x_nchw, kernel_params):
    """STDCModule forward (stride=1).  x_nchw: (N, Cin, H, W) float32."""
    (w1, b1), (w2, b2), (w3, b3), (w4, b4) = kernel_params
    N, Cin, H, W = x_nchw.shape
    HW = H * W
    C1, C2, C3, C4 = w1.shape[0], w2.shape[0], w3.shape[0], w4.shape[0]
    Ctot = C1 + C2 + C3 + C4

    # Left halo rounded up to a multiple of 128 so the per-conv interior store
    # into pad_scr starts lane-aligned; total lane count rounded to 128 too.
    S = ((W + 1 + 127) // 128) * 128
    L = ((S + HW + W + 1 + 127) // 128) * 128

    x_flat = x_nchw.reshape(N, Cin, HW)   # free bitcast: NCHW is contiguous

    # Column masks realising padding=1 along W for the flattened +-1 shifts.
    col = np.arange(HW) % W
    mask_not_first = jnp.asarray((col != 0).reshape(1, HW), dtype=jnp.bfloat16)
    mask_not_last = jnp.asarray((col != W - 1).reshape(1, HW), dtype=jnp.bfloat16)

    const2 = lambda n: (0, 0)             # resident (constant-index) operands

    out = pl.pallas_call(
        _make_stdc_kernel(H, W, S, L),
        out_shape=jax.ShapeDtypeStruct((N, Ctot, HW), jnp.float32),
        grid_spec=pltpu.PrefetchScalarGridSpec(
            num_scalar_prefetch=0,
            grid=(N,),
            in_specs=[
                pl.BlockSpec((1, Cin, HW), lambda n: (n, 0, 0)),
                pl.BlockSpec((C1, Cin), const2),
                pl.BlockSpec((C1, 1), const2),
                pl.BlockSpec((C2, 9 * C1), const2),
                pl.BlockSpec((C2, 1), const2),
                pl.BlockSpec((C3, 9 * C2), const2),
                pl.BlockSpec((C3, 1), const2),
                pl.BlockSpec((C4, 9 * C3), const2),
                pl.BlockSpec((C4, 1), const2),
                pl.BlockSpec((1, HW), const2),
                pl.BlockSpec((1, HW), const2),
            ],
            out_specs=pl.BlockSpec((1, Ctot, HW), lambda n: (n, 0, 0)),
            scratch_shapes=[
                # zero-haloed flattened activation (max cin = C1), bf16, 128-aligned
                pltpu.VMEM((C1, L), jnp.bfloat16),
                # persistent im2col slab (dw-major), fed straight to the MXU
                pltpu.VMEM((9 * C1, HW), jnp.bfloat16),
            ],
        ),
        compiler_params=pltpu.CompilerParams(
            dimension_semantics=("parallel",),   # batch across TCs (v7x megacore)
            vmem_limit_bytes=32 * 1024 * 1024,   # explicit; ample for these shapes
        ),
    )(x_flat, w1, b1, w2, b2, w3, b3, w4, b4, mask_not_first, mask_not_last)

    return out.reshape(N, Ctot, H, W)     # free bitcast back to NCHW


def _reference(x, conv_ws, bns, eps=1e-5):
    """Pure-JAX f32 reference of STDCModule (stride=1, eval-mode BN)."""
    def cba(h, w, bn):
        gamma, beta, mean, var = bn
        y = jax.lax.conv_general_dilated(
            h, w, window_strides=(1, 1), padding="SAME",
            dimension_numbers=("NCHW", "OIHW", "NCHW"),
            precision=jax.lax.Precision.HIGHEST)
        s = gamma / jnp.sqrt(var + eps)
        y = y * s[None, :, None, None] + (beta - mean * s)[None, :, None, None]
        return jnp.maximum(y, 0.0)

    x1 = cba(x, conv_ws[0], bns[0])
    x2 = cba(x1, conv_ws[1], bns[1])
    x3 = cba(x2, conv_ws[2], bns[2])
    x4 = cba(x3, conv_ws[3], bns[3])
    return jnp.concatenate([x1, x2, x3, x4], axis=1)


if __name__ == "__main__":
    # Small shapes consistent with the module: out_channels divisible by 8;
    # branch widths are out/2, out/4, out/8, out/8.
    N, Cin, H, W = 2, 16, 16, 16
    out_channels = 64
    C1, C2, C3, C4 = (out_channels // 2, out_channels // 4,
                      out_channels // 8, out_channels // 8)

    key = jax.random.PRNGKey(0)
    kx, k1, k2, k3, k4 = jax.random.split(key, 5)
    x = jax.random.normal(kx, (N, Cin, H, W), jnp.float32)

    def make_cba(k, cin, cout, ksize):
        kk = jax.random.split(k, 5)
        w = 0.1 * jax.random.normal(kk[0], (cout, cin, ksize, ksize), jnp.float32)
        gamma = 1.0 + 0.1 * jax.random.normal(kk[1], (cout,), jnp.float32)
        beta = 0.1 * jax.random.normal(kk[2], (cout,), jnp.float32)
        mean = 0.1 * jax.random.normal(kk[3], (cout,), jnp.float32)
        var = 0.5 + jnp.abs(jax.random.normal(kk[4], (cout,), jnp.float32))
        return w, (gamma, beta, mean, var)

    w1, bn1 = make_cba(k1, Cin, C1, 1)   # block1: ConvBNAct(in, out/2, 1)
    w2, bn2 = make_cba(k2, C1, C2, 3)    # block2: ConvBNAct(out/2, out/4, 3)
    w3, bn3 = make_cba(k3, C2, C3, 3)    # block3: ConvBNAct(out/4, out/8, 3)
    w4, bn4 = make_cba(k4, C3, C4, 3)    # block4: ConvBNAct(out/8, out/8, 3)
    conv_ws = (w1, w2, w3, w4)
    bns = (bn1, bn2, bn3, bn4)

    params = prepare_params(conv_ws, bns)
    out = stdc_forward(x, params)
    out = jax.block_until_ready(out)

    # Correctness vs pure-JAX f32 reference.  Tolerance loosened relative to a
    # pure-f32 kernel because matmul inputs are bf16 (with f32 accumulation)
    # through a 3-conv chain.
    ref = _reference(x, conv_ws, bns)
    np.testing.assert_allclose(np.asarray(out), np.asarray(ref),
                               rtol=5e-2, atol=5e-2)
    print("KERNEL_OK")
</pallas_src>

<mosaic_0001>
module attributes {stable_mosaic.version = 11 : i64} {
  func.func @kernel(%arg0: i32, %arg1: memref<1x16x256xf32, #tpu.memory_space<vmem>>, %arg2: memref<32x16xbf16, #tpu.memory_space<vmem>>, %arg3: memref<32x1xf32, #tpu.memory_space<vmem>>, %arg4: memref<16x288xbf16, #tpu.memory_space<vmem>>, %arg5: memref<16x1xf32, #tpu.memory_space<vmem>>, %arg6: memref<8x144xbf16, #tpu.memory_space<vmem>>, %arg7: memref<8x1xf32, #tpu.memory_space<vmem>>, %arg8: memref<8x72xbf16, #tpu.memory_space<vmem>>, %arg9: memref<8x1xf32, #tpu.memory_space<vmem>>, %arg10: memref<1x256xbf16, #tpu.memory_space<vmem>>, %arg11: memref<1x256xbf16, #tpu.memory_space<vmem>>, %arg12: memref<1x64x256xf32, #tpu.memory_space<vmem>>, %arg13: memref<32x512xbf16, #tpu.memory_space<vmem>>, %arg14: memref<288x256xbf16, #tpu.memory_space<vmem>>) attributes {dimension_semantics = [#tpu.dimension_semantics<parallel>], iteration_bounds = array<i64: 2>, scalar_prefetch = 0 : i64, scratch_operands = 2 : i64, tpu.core_type = #tpu.core_type<tc>, window_params = [{transform_indices = @transform_0, window_bounds = array<i64: 1, 16, 256>}, {pipeline_mode = #tpu.pipeline_mode<synchronous>, transform_indices = @transform_1, window_bounds = array<i64: 32, 16>}, {pipeline_mode = #tpu.pipeline_mode<synchronous>, transform_indices = @transform_2, window_bounds = array<i64: 32, 1>}, {pipeline_mode = #tpu.pipeline_mode<synchronous>, transform_indices = @transform_3, window_bounds = array<i64: 16, 288>}, {pipeline_mode = #tpu.pipeline_mode<synchronous>, transform_indices = @transform_4, window_bounds = array<i64: 16, 1>}, {pipeline_mode = #tpu.pipeline_mode<synchronous>, transform_indices = @transform_5, window_bounds = array<i64: 8, 144>}, {pipeline_mode = #tpu.pipeline_mode<synchronous>, transform_indices = @transform_6, window_bounds = array<i64: 8, 1>}, {pipeline_mode = #tpu.pipeline_mode<synchronous>, transform_indices = @transform_7, window_bounds = array<i64: 8, 72>}, {pipeline_mode = #tpu.pipeline_mode<synchronous>, transform_indices = @transform_8, window_bounds = array<i64: 8, 1>}, {pipeline_mode = #tpu.pipeline_mode<synchronous>, transform_indices = @transform_9, window_bounds = array<i64: 1, 256>}, {pipeline_mode = #tpu.pipeline_mode<synchronous>, transform_indices = @transform_10, window_bounds = array<i64: 1, 256>}, {transform_indices = @transform_11, window_bounds = array<i64: 1, 64, 256>}]} {
    %cst = arith.constant 0.000000e+00 : bf16
    %0 = vector.broadcast %cst : bf16 to vector<32x128xbf16>
    %c0 = arith.constant 0 : index
    %c0_0 = arith.constant 0 : index
    %1 = vector.load %arg13[%c0, %c0_0] : memref<32x512xbf16, #tpu.memory_space<vmem>>, vector<32x128xbf16>
    tpu.vector_store %arg13[%c0, %c0_0], %0 {strides = array<i32>} : memref<32x512xbf16, #tpu.memory_space<vmem>>, vector<32x128xbf16>,
    %cst_1 = arith.constant 0.000000e+00 : bf16
    %2 = vector.broadcast %cst_1 : bf16 to vector<32x128xbf16>
    %c0_2 = arith.constant 0 : index
    %c384 = arith.constant 384 : index
    %3 = vector.load %arg13[%c0_2, %c384] : memref<32x512xbf16, #tpu.memory_space<vmem>>, vector<32x128xbf16>
    tpu.vector_store %arg13[%c0_2, %c384], %2 {strides = array<i32>} : memref<32x512xbf16, #tpu.memory_space<vmem>>, vector<32x128xbf16>,
    %c0_3 = arith.constant 0 : index
    %c0_4 = arith.constant 0 : index
    %c0_5 = arith.constant 0 : index
    %4 = vector.load %arg1[%c0_3, %c0_4, %c0_5] : memref<1x16x256xf32, #tpu.memory_space<vmem>>, vector<1x16x256xf32>
    %5 = vector.shape_cast %4 : vector<1x16x256xf32> to vector<16x256xf32>
    %6 = arith.truncf %5 : vector<16x256xf32> to vector<16x256xbf16>
    %c0_6 = arith.constant 0 : index
    %c0_7 = arith.constant 0 : index
    %7 = vector.load %arg2[%c0_6, %c0_7] : memref<32x16xbf16, #tpu.memory_space<vmem>>, vector<32x16xbf16>
    %cst_8 = arith.constant dense<0.000000e+00> : vector<32x256xf32>
    %8 = tpu.matmul %7, %6, %cst_8 {dimension_numbers = #tpu.dot_dimension_numbers<[1], [0], [0], [1], [0, 0, 1, 1], [], []>} : vector<32x16xbf16>, vector<16x256xbf16>, vector<32x256xf32> -> vector<32x256xf32>
    %c0_9 = arith.constant 0 : index
    %c0_10 = arith.constant 0 : index
    %9 = vector.load %arg3[%c0_9, %c0_10] : memref<32x1xf32, #tpu.memory_space<vmem>>, vector<32x1xf32>
    %10 = vector.broadcast %9 : vector<32x1xf32> to vector<32x256xf32>
    %11 = arith.addf %8, %10 : vector<32x256xf32>
    %cst_11 = arith.constant 0.000000e+00 : f32
    %12 = vector.broadcast %cst_11 : f32 to vector<32x256xf32>
    %13 = arith.maximumf %11, %12 : vector<32x256xf32>
    %c0_12 = arith.constant 0 : index
    %c0_13 = arith.constant 0 : index
    %c0_14 = arith.constant 0 : index
    %14 = vector.load %arg12[%c0_12, %c0_13, %c0_14] : memref<1x64x256xf32, #tpu.memory_space<vmem>>, vector<1x32x256xf32>
    %15 = vector.shape_cast %14 : vector<1x32x256xf32> to vector<32x256xf32>
    %16 = vector.shape_cast %13 : vector<32x256xf32> to vector<1x32x256xf32>
    tpu.vector_store %arg12[%c0_12, %c0_13, %c0_14], %16 {strides = array<i32>} : memref<1x64x256xf32, #tpu.memory_space<vmem>>, vector<1x32x256xf32>,
    %17 = arith.truncf %13 : vector<32x256xf32> to vector<32x256xbf16>
    %c0_15 = arith.constant 0 : index
    %c128 = arith.constant 128 : index
    %18 = vector.load %arg13[%c0_15, %c128] : memref<32x512xbf16, #tpu.memory_space<vmem>>, vector<32x256xbf16>
    tpu.vector_store %arg13[%c0_15, %c128], %17 {strides = array<i32>} : memref<32x512xbf16, #tpu.memory_space<vmem>>, vector<32x256xbf16>,
    %c0_16 = arith.constant 0 : index
    %c0_17 = arith.constant 0 : index
    %19 = vector.load %arg10[%c0_16, %c0_17] : memref<1x256xbf16, #tpu.memory_space<vmem>>, vector<1x256xbf16>
    %20 = vector.shape_cast %19 : vector<1x256xbf16> to vector<1x256xbf16>
    %21 = vector.broadcast %20 : vector<1x256xbf16> to vector<32x256xbf16>
    %c0_18 = arith.constant 0 : index
    %c0_19 = arith.constant 0 : index
    %22 = vector.load %arg11[%c0_18, %c0_19] : memref<1x256xbf16, #tpu.memory_space<vmem>>, vector<1x256xbf16>
    %23 = vector.shape_cast %22 : vector<1x256xbf16> to vector<1x256xbf16>
    %24 = vector.broadcast %23 : vector<1x256xbf16> to vector<32x256xbf16>
    %c0_20 = arith.constant 0 : index
    %c111 = arith.constant 111 : index
    %25 = vector.load %arg13[%c0_20, %c111] : memref<32x512xbf16, #tpu.memory_space<vmem>>, vector<32x256xbf16>
    %26 = arith.mulf %25, %21 : vector<32x256xbf16>
    %c0_21 = arith.constant 0 : index
    %c0_22 = arith.constant 0 : index
    %27 = vector.load %arg14[%c0_21, %c0_22] : memref<288x256xbf16, #tpu.memory_space<vmem>>, vector<32x256xbf16>
    tpu.vector_store %arg14[%c0_21, %c0_22], %26 {strides = array<i32>} : memref<288x256xbf16, #tpu.memory_space<vmem>>, vector<32x256xbf16>,
    %c0_23 = arith.constant 0 : index
    %c127 = arith.constant 127 : index
    %28 = vector.load %arg13[%c0_23, %c127] : memref<32x512xbf16, #tpu.memory_space<vmem>>, vector<32x256xbf16>
    %29 = arith.mulf %28, %21 : vector<32x256xbf16>
    %c32 = arith.constant 32 : index
    %c0_24 = arith.constant 0 : index
    %30 = vector.load %arg14[%c32, %c0_24] : memref<288x256xbf16, #tpu.memory_space<vmem>>, vector<32x256xbf16>
    tpu.vector_store %arg14[%c32, %c0_24], %29 {strides = array<i32>} : memref<288x256xbf16, #tpu.memory_space<vmem>>, vector<32x256xbf16>,
    %c0_25 = arith.constant 0 : index
    %c143 = arith.constant 143 : index
    %31 = vector.load %arg13[%c0_25, %c143] : memref<32x512xbf16, #tpu.memory_space<vmem>>, vector<32x256xbf16>
    %32 = arith.mulf %31, %21 : vector<32x256xbf16>
    %c64 = arith.constant 64 : index
    %c0_26 = arith.constant 0 : index
    %33 = vector.load %arg14[%c64, %c0_26] : memref<288x256xbf16, #tpu.memory_space<vmem>>, vector<32x256xbf16>
    tpu.vector_store %arg14[%c64, %c0_26], %32 {strides = array<i32>} : memref<288x256xbf16, #tpu.memory_space<vmem>>, vector<32x256xbf16>,
    %c0_27 = arith.constant 0 : index
    %c112 = arith.constant 112 : index
    %34 = vector.load %arg13[%c0_27, %c112] : memref<32x512xbf16, #tpu.memory_space<vmem>>, vector<32x256xbf16>
    %c96 = arith.constant 96 : index
    %c0_28 = arith.constant 0 : index
    %35 = vector.load %arg14[%c96, %c0_28] : memref<288x256xbf16, #tpu.memory_space<vmem>>, vector<32x256xbf16>
    tpu.vector_store %arg14[%c96, %c0_28], %34 {strides = array<i32>} : memref<288x256xbf16, #tpu.memory_space<vmem>>, vector<32x256xbf16>,
    %c0_29 = arith.constant 0 : index
    %c128_30 = arith.constant 128 : index
    %36 = vector.load %arg13[%c0_29, %c128_30] : memref<32x512xbf16, #tpu.memory_space<vmem>>, vector<32x256xbf16>
    %c128_31 = arith.constant 128 : index
    %c0_32 = arith.constant 0 : index
    %37 = vector.load %arg14[%c128_31, %c0_32] : memref<288x256xbf16, #tpu.memory_space<vmem>>, vector<32x256xbf16>
    tpu.vector_store %arg14[%c128_31, %c0_32], %36 {strides = array<i32>} : memref<288x256xbf16, #tpu.memory_space<vmem>>, vector<32x256xbf16>,
    %c0_33 = arith.constant 0 : index
    %c144 = arith.constant 144 : index
    %38 = vector.load %arg13[%c0_33, %c144] : memref<32x512xbf16, #tpu.memory_space<vmem>>, vector<32x256xbf16>
    %c160 = arith.constant 160 : index
    %c0_34 = arith.constant 0 : index
    %39 = vector.load %arg14[%c160, %c0_34] : memref<288x256xbf16, #tpu.memory_space<vmem>>, vector<32x256xbf16>
    tpu.vector_store %arg14[%c160, %c0_34], %38 {strides = array<i32>} : memref<288x256xbf16, #tpu.memory_space<vmem>>, vector<32x256xbf16>,
    %c0_35 = arith.constant 0 : index
    %c113 = arith.constant 113 : index
    %40 = vector.load %arg13[%c0_35, %c113] : memref<32x512xbf16, #tpu.memory_space<vmem>>, vector<32x256xbf16>
    %41 = arith.mulf %40, %24 : vector<32x256xbf16>
    %c192 = arith.constant 192 : index
    %c0_36 = arith.constant 0 : index
    %42 = vector.load %arg14[%c192, %c0_36] : memref<288x256xbf16, #tpu.memory_space<vmem>>, vector<32x256xbf16>
    tpu.vector_store %arg14[%c192, %c0_36], %41 {strides = array<i32>} : memref<288x256xbf16, #tpu.memory_space<vmem>>, vector<32x256xbf16>,
    %c0_37 = arith.constant 0 : index
    %c129 = arith.constant 129 : index
    %43 = vector.load %arg13[%c0_37, %c129] : memref<32x512xbf16, #tpu.memory_space<vmem>>, vector<32x256xbf16>
    %44 = arith.mulf %43, %24 : vector<32x256xbf16>
    %c224 = arith.constant 224 : index
    %c0_38 = arith.constant 0 : index
    %45 = vector.load %arg14[%c224, %c0_38] : memref<288x256xbf16, #tpu.memory_space<vmem>>, vector<32x256xbf16>
    tpu.vector_store %arg14[%c224, %c0_38], %44 {strides = array<i32>} : memref<288x256xbf16, #tpu.memory_space<vmem>>, vector<32x256xbf16>,
    %c0_39 = arith.constant 0 : index
    %c145 = arith.constant 145 : index
    %46 = vector.load %arg13[%c0_39, %c145] : memref<32x512xbf16, #tpu.memory_space<vmem>>, vector<32x256xbf16>
    %47 = arith.mulf %46, %24 : vector<32x256xbf16>
    %c256 = arith.constant 256 : index
    %c0_40 = arith.constant 0 : index
    %48 = vector.load %arg14[%c256, %c0_40] : memref<288x256xbf16, #tpu.memory_space<vmem>>, vector<32x256xbf16>
    tpu.vector_store %arg14[%c256, %c0_40], %47 {strides = array<i32>} : memref<288x256xbf16, #tpu.memory_space<vmem>>, vector<32x256xbf16>,
    %c0_41 = arith.constant 0 : index
    %c0_42 = arith.constant 0 : index
    %49 = vector.load %arg4[%c0_41, %c0_42] : memref<16x288xbf16, #tpu.memory_space<vmem>>, vector<16x288xbf16>
    %c0_43 = arith.constant 0 : index
    %c0_44 = arith.constant 0 : index
    %50 = vector.load %arg14[%c0_43, %c0_44] : memref<288x256xbf16, #tpu.memory_space<vmem>>, vector<288x256xbf16>
    %cst_45 = arith.constant dense<0.000000e+00> : vector<16x256xf32>
    %51 = tpu.matmul %49, %50, %cst_45 {dimension_numbers = #tpu.dot_dimension_numbers<[1], [0], [0], [1], [0, 0, 1, 1], [], []>} : vector<16x288xbf16>, vector<288x256xbf16>, vector<16x256xf32> -> vector<16x256xf32>
    %c0_46 = arith.constant 0 : index
    %c0_47 = arith.constant 0 : index
    %52 = vector.load %arg5[%c0_46, %c0_47] : memref<16x1xf32, #tpu.memory_space<vmem>>, vector<16x1xf32>
    %53 = vector.broadcast %52 : vector<16x1xf32> to vector<16x256xf32>
    %54 = arith.addf %51, %53 : vector<16x256xf32>
    %cst_48 = arith.constant 0.000000e+00 : f32
    %55 = vector.broadcast %cst_48 : f32 to vector<16x256xf32>
    %56 = arith.maximumf %54, %55 : vector<16x256xf32>
    %c0_49 = arith.constant 0 : index
    %c32_50 = arith.constant 32 : index
    %c0_51 = arith.constant 0 : index
    %57 = vector.load %arg12[%c0_49, %c32_50, %c0_51] : memref<1x64x256xf32, #tpu.memory_space<vmem>>, vector<1x16x256xf32>
    %58 = vector.shape_cast %57 : vector<1x16x256xf32> to vector<16x256xf32>
    %59 = vector.shape_cast %56 : vector<16x256xf32> to vector<1x16x256xf32>
    tpu.vector_store %arg12[%c0_49, %c32_50, %c0_51], %59 {strides = array<i32>} : memref<1x64x256xf32, #tpu.memory_space<vmem>>, vector<1x16x256xf32>,
    %60 = arith.truncf %56 : vector<16x256xf32> to vector<16x256xbf16>
    %c0_52 = arith.constant 0 : index
    %c128_53 = arith.constant 128 : index
    %61 = vector.load %arg13[%c0_52, %c128_53] : memref<32x512xbf16, #tpu.memory_space<vmem>>, vector<16x256xbf16>
    tpu.vector_store %arg13[%c0_52, %c128_53], %60 {strides = array<i32>} : memref<32x512xbf16, #tpu.memory_space<vmem>>, vector<16x256xbf16>,
    %c0_54 = arith.constant 0 : index
    %c0_55 = arith.constant 0 : index
    %62 = vector.load %arg10[%c0_54, %c0_55] : memref<1x256xbf16, #tpu.memory_space<vmem>>, vector<1x256xbf16>
    %63 = vector.shape_cast %62 : vector<1x256xbf16> to vector<1x256xbf16>
    %64 = vector.broadcast %63 : vector<1x256xbf16> to vector<16x256xbf16>
    %c0_56 = arith.constant 0 : index
    %c0_57 = arith.constant 0 : index
    %65 = vector.load %arg11[%c0_56, %c0_57] : memref<1x256xbf16, #tpu.memory_space<vmem>>, vector<1x256xbf16>
    %66 = vector.shape_cast %65 : vector<1x256xbf16> to vector<1x256xbf16>
    %67 = vector.broadcast %66 : vector<1x256xbf16> to vector<16x256xbf16>
    %c0_58 = arith.constant 0 : index
    %c111_59 = arith.constant 111 : index
    %68 = vector.load %arg13[%c0_58, %c111_59] : memref<32x512xbf16, #tpu.memory_space<vmem>>, vector<16x256xbf16>
    %69 = arith.mulf %68, %64 : vector<16x256xbf16>
    %c0_60 = arith.constant 0 : index
    %c0_61 = arith.constant 0 : index
    %70 = vector.load %arg14[%c0_60, %c0_61] : memref<288x256xbf16, #tpu.memory_space<vmem>>, vector<16x256xbf16>
    tpu.vector_store %arg14[%c0_60, %c0_61], %69 {strides = array<i32>} : memref<288x256xbf16, #tpu.memory_space<vmem>>, vector<16x256xbf16>,
    %c0_62 = arith.constant 0 : index
    %c127_63 = arith.constant 127 : index
    %71 = vector.load %arg13[%c0_62, %c127_63] : memref<32x512xbf16, #tpu.memory_space<vmem>>, vector<16x256xbf16>
    %72 = arith.mulf %71, %64 : vector<16x256xbf16>
    %c16 = arith.constant 16 : index
    %c0_64 = arith.constant 0 : index
    %73 = vector.load %arg14[%c16, %c0_64] : memref<288x256xbf16, #tpu.memory_space<vmem>>, vector<16x256xbf16>
    tpu.vector_store %arg14[%c16, %c0_64], %72 {strides = array<i32>} : memref<288x256xbf16, #tpu.memory_space<vmem>>, vector<16x256xbf16>,
    %c0_65 = arith.constant 0 : index
    %c143_66 = arith.constant 143 : index
    %74 = vector.load %arg13[%c0_65, %c143_66] : memref<32x512xbf16, #tpu.memory_space<vmem>>, vector<16x256xbf16>
    %75 = arith.mulf %74, %64 : vector<16x256xbf16>
    %c32_67 = arith.constant 32 : index
    %c0_68 = arith.constant 0 : index
    %76 = vector.load %arg14[%c32_67, %c0_68] : memref<288x256xbf16, #tpu.memory_space<vmem>>, vector<16x256xbf16>
    tpu.vector_store %arg14[%c32_67, %c0_68], %75 {strides = array<i32>} : memref<288x256xbf16, #tpu.memory_space<vmem>>, vector<16x256xbf16>,
    %c0_69 = arith.constant 0 : index
    %c112_70 = arith.constant 112 : index
    %77 = vector.load %arg13[%c0_69, %c112_70] : memref<32x512xbf16, #tpu.memory_space<vmem>>, vector<16x256xbf16>
    %c48 = arith.constant 48 : index
    %c0_71 = arith.constant 0 : index
    %78 = vector.load %arg14[%c48, %c0_71] : memref<288x256xbf16, #tpu.memory_space<vmem>>, vector<16x256xbf16>
    tpu.vector_store %arg14[%c48, %c0_71], %77 {strides = array<i32>} : memref<288x256xbf16, #tpu.memory_space<vmem>>, vector<16x256xbf16>,
    %c0_72 = arith.constant 0 : index
    %c128_73 = arith.constant 128 : index
    %79 = vector.load %arg13[%c0_72, %c128_73] : memref<32x512xbf16, #tpu.memory_space<vmem>>, vector<16x256xbf16>
    %c64_74 = arith.constant 64 : index
    %c0_75 = arith.constant 0 : index
    %80 = vector.load %arg14[%c64_74, %c0_75] : memref<288x256xbf16, #tpu.memory_space<vmem>>, vector<16x256xbf16>
    tpu.vector_store %arg14[%c64_74, %c0_75], %79 {strides = array<i32>} : memref<288x256xbf16, #tpu.memory_space<vmem>>, vector<16x256xbf16>,
    %c0_76 = arith.constant 0 : index
    %c144_77 = arith.constant 144 : index
    %81 = vector.load %arg13[%c0_76, %c144_77] : memref<32x512xbf16, #tpu.memory_space<vmem>>, vector<16x256xbf16>
    %c80 = arith.constant 80 : index
    %c0_78 = arith.constant 0 : index
    %82 = vector.load %arg14[%c80, %c0_78] : memref<288x256xbf16, #tpu.memory_space<vmem>>, vector<16x256xbf16>
    tpu.vector_store %arg14[%c80, %c0_78], %81 {strides = array<i32>} : memref<288x256xbf16, #tpu.memory_space<vmem>>, vector<16x256xbf16>,
    %c0_79 = arith.constant 0 : index
    %c113_80 = arith.constant 113 : index
    %83 = vector.load %arg13[%c0_79, %c113_80] : memref<32x512xbf16, #tpu.memory_space<vmem>>, vector<16x256xbf16>
    %84 = arith.mulf %83, %67 : vector<16x256xbf16>
    %c96_81 = arith.constant 96 : index
    %c0_82 = arith.constant 0 : index
    %85 = vector.load %arg14[%c96_81, %c0_82] : memref<288x256xbf16, #tpu.memory_space<vmem>>, vector<16x256xbf16>
    tpu.vector_store %arg14[%c96_81, %c0_82], %84 {strides = array<i32>} : memref<288x256xbf16, #tpu.memory_space<vmem>>, vector<16x256xbf16>,
    %c0_83 = arith.constant 0 : index
    %c129_84 = arith.constant 129 : index
    %86 = vector.load %arg13[%c0_83, %c129_84] : memref<32x512xbf16, #tpu.memory_space<vmem>>, vector<16x256xbf16>
    %87 = arith.mulf %86, %67 : vector<16x256xbf16>
    %c112_85 = arith.constant 112 : index
    %c0_86 = arith.constant 0 : index
    %88 = vector.load %arg14[%c112_85, %c0_86] : memref<288x256xbf16, #tpu.memory_space<vmem>>, vector<16x256xbf16>
    tpu.vector_store %arg14[%c112_85, %c0_86], %87 {strides = array<i32>} : memref<288x256xbf16, #tpu.memory_space<vmem>>, vector<16x256xbf16>,
    %c0_87 = arith.constant 0 : index
    %c145_88 = arith.constant 145 : index
    %89 = vector.load %arg13[%c0_87, %c145_88] : memref<32x512xbf16, #tpu.memory_space<vmem>>, vector<16x256xbf16>
    %90 = arith.mulf %89, %67 : vector<16x256xbf16>
    %c128_89 = arith.constant 128 : index
    %c0_90 = arith.constant 0 : index
    %91 = vector.load %arg14[%c128_89, %c0_90] : memref<288x256xbf16, #tpu.memory_space<vmem>>, vector<16x256xbf16>
    tpu.vector_store %arg14[%c128_89, %c0_90], %90 {strides = array<i32>} : memref<288x256xbf16, #tpu.memory_space<vmem>>, vector<16x256xbf16>,
    %c0_91 = arith.constant 0 : index
    %c0_92 = arith.constant 0 : index
    %92 = vector.load %arg6[%c0_91, %c0_92] : memref<8x144xbf16, #tpu.memory_space<vmem>>, vector<8x144xbf16>
    %c0_93 = arith.constant 0 : index
    %c0_94 = arith.constant 0 : index
    %93 = vector.load %arg14[%c0_93, %c0_94] : memref<288x256xbf16, #tpu.memory_space<vmem>>, vector<144x256xbf16>
    %cst_95 = arith.constant dense<0.000000e+00> : vector<8x256xf32>
    %94 = tpu.matmul %92, %93, %cst_95 {dimension_numbers = #tpu.dot_dimension_numbers<[1], [0], [0], [1], [0, 0, 1, 1], [], []>} : vector<8x144xbf16>, vector<144x256xbf16>, vector<8x256xf32> -> vector<8x256xf32>
    %c0_96 = arith.constant 0 : index
    %c0_97 = arith.constant 0 : index
    %95 = vector.load %arg7[%c0_96, %c0_97] : memref<8x1xf32, #tpu.memory_space<vmem>>, vector<8x1xf32>
    %96 = vector.broadcast %95 : vector<8x1xf32> to vector<8x256xf32>
    %97 = arith.addf %94, %96 : vector<8x256xf32>
    %cst_98 = arith.constant 0.000000e+00 : f32
    %98 = vector.broadcast %cst_98 : f32 to vector<8x256xf32>
    %99 = arith.maximumf %97, %98 : vector<8x256xf32>
    %c0_99 = arith.constant 0 : index
    %c48_100 = arith.constant 48 : index
    %c0_101 = arith.constant 0 : index
    %100 = vector.load %arg12[%c0_99, %c48_100, %c0_101] : memref<1x64x256xf32, #tpu.memory_space<vmem>>, vector<1x8x256xf32>
    %101 = vector.shape_cast %100 : vector<1x8x256xf32> to vector<8x256xf32>
    %102 = vector.shape_cast %99 : vector<8x256xf32> to vector<1x8x256xf32>
    tpu.vector_store %arg12[%c0_99, %c48_100, %c0_101], %102 {strides = array<i32>} : memref<1x64x256xf32, #tpu.memory_space<vmem>>, vector<1x8x256xf32>,
    %103 = arith.truncf %99 : vector<8x256xf32> to vector<8x256xbf16>
    %c0_102 = arith.constant 0 : index
    %c128_103 = arith.constant 128 : index
    %104 = vector.load %arg13[%c0_102, %c128_103] : memref<32x512xbf16, #tpu.memory_space<vmem>>, vector<8x256xbf16>
    tpu.vector_store %arg13[%c0_102, %c128_103], %103 {strides = array<i32>} : memref<32x512xbf16, #tpu.memory_space<vmem>>, vector<8x256xbf16>,
    %c0_104 = arith.constant 0 : index
    %c0_105 = arith.constant 0 : index
    %105 = vector.load %arg10[%c0_104, %c0_105] : memref<1x256xbf16, #tpu.memory_space<vmem>>, vector<1x256xbf16>
    %106 = vector.shape_cast %105 : vector<1x256xbf16> to vector<1x256xbf16>
    %107 = vector.broadcast %106 : vector<1x256xbf16> to vector<8x256xbf16>
    %c0_106 = arith.constant 0 : index
    %c0_107 = arith.constant 0 : index
    %108 = vector.load %arg11[%c0_106, %c0_107] : memref<1x256xbf16, #tpu.memory_space<vmem>>, vector<1x256xbf16>
    %109 = vector.shape_cast %108 : vector<1x256xbf16> to vector<1x256xbf16>
    %110 = vector.broadcast %109 : vector<1x256xbf16> to vector<8x256xbf16>
    %c0_108 = arith.constant 0 : index
    %c111_109 = arith.constant 111 : index
    %111 = vector.load %arg13[%c0_108, %c111_109] : memref<32x512xbf16, #tpu.memory_space<vmem>>, vector<8x256xbf16>
    %112 = arith.mulf %111, %107 : vector<8x256xbf16>
    %c0_110 = arith.constant 0 : index
    %c0_111 = arith.constant 0 : index
    %113 = vector.load %arg14[%c0_110, %c0_111] : memref<288x256xbf16, #tpu.memory_space<vmem>>, vector<8x256xbf16>
    tpu.vector_store %arg14[%c0_110, %c0_111], %112 {strides = array<i32>} : memref<288x256xbf16, #tpu.memory_space<vmem>>, vector<8x256xbf16>,
    %c0_112 = arith.constant 0 : index
    %c127_113 = arith.constant 127 : index
    %114 = vector.load %arg13[%c0_112, %c127_113] : memref<32x512xbf16, #tpu.memory_space<vmem>>, vector<8x256xbf16>
    %115 = arith.mulf %114, %107 : vector<8x256xbf16>
    %c8 = arith.constant 8 : index
    %c0_114 = arith.constant 0 : index
    %116 = vector.load %arg14[%c8, %c0_114] : memref<288x256xbf16, #tpu.memory_space<vmem>>, vector<8x256xbf16>
    tpu.vector_store %arg14[%c8, %c0_114], %115 {strides = array<i32>} : memref<288x256xbf16, #tpu.memory_space<vmem>>, vector<8x256xbf16>,
    %c0_115 = arith.constant 0 : index
    %c143_116 = arith.constant 143 : index
    %117 = vector.load %arg13[%c0_115, %c143_116] : memref<32x512xbf16, #tpu.memory_space<vmem>>, vector<8x256xbf16>
    %118 = arith.mulf %117, %107 : vector<8x256xbf16>
    %c16_117 = arith.constant 16 : index
    %c0_118 = arith.constant 0 : index
    %119 = vector.load %arg14[%c16_117, %c0_118] : memref<288x256xbf16, #tpu.memory_space<vmem>>, vector<8x256xbf16>
    tpu.vector_store %arg14[%c16_117, %c0_118], %118 {strides = array<i32>} : memref<288x256xbf16, #tpu.memory_space<vmem>>, vector<8x256xbf16>,
    %c0_119 = arith.constant 0 : index
    %c112_120 = arith.constant 112 : index
    %120 = vector.load %arg13[%c0_119, %c112_120] : memref<32x512xbf16, #tpu.memory_space<vmem>>, vector<8x256xbf16>
    %c24 = arith.constant 24 : index
    %c0_121 = arith.constant 0 : index
    %121 = vector.load %arg14[%c24, %c0_121] : memref<288x256xbf16, #tpu.memory_space<vmem>>, vector<8x256xbf16>
    tpu.vector_store %arg14[%c24, %c0_121], %120 {strides = array<i32>} : memref<288x256xbf16, #tpu.memory_space<vmem>>, vector<8x256xbf16>,
    %c0_122 = arith.constant 0 : index
    %c128_123 = arith.constant 128 : index
    %122 = vector.load %arg13[%c0_122, %c128_123] : memref<32x512xbf16, #tpu.memory_space<vmem>>, vector<8x256xbf16>
    %c32_124 = arith.constant 32 : index
    %c0_125 = arith.constant 0 : index
    %123 = vector.load %arg14[%c32_124, %c0_125] : memref<288x256xbf16, #tpu.memory_space<vmem>>, vector<8x256xbf16>
    tpu.vector_store %arg14[%c32_124, %c0_125], %122 {strides = array<i32>} : memref<288x256xbf16, #tpu.memory_space<vmem>>, vector<8x256xbf16>,
    %c0_126 = arith.constant 0 : index
    %c144_127 = arith.constant 144 : index
    %124 = vector.load %arg13[%c0_126, %c144_127] : memref<32x512xbf16, #tpu.memory_space<vmem>>, vector<8x256xbf16>
    %c40 = arith.constant 40 : index
    %c0_128 = arith.constant 0 : index
    %125 = vector.load %arg14[%c40, %c0_128] : memref<288x256xbf16, #tpu.memory_space<vmem>>, vector<8x256xbf16>
    tpu.vector_store %arg14[%c40, %c0_128], %124 {strides = array<i32>} : memref<288x256xbf16, #tpu.memory_space<vmem>>, vector<8x256xbf16>,
    %c0_129 = arith.constant 0 : index
    %c113_130 = arith.constant 113 : index
    %126 = vector.load %arg13[%c0_129, %c113_130] : memref<32x512xbf16, #tpu.memory_space<vmem>>, vector<8x256xbf16>
    %127 = arith.mulf %126, %110 : vector<8x256xbf16>
    %c48_131 = arith.constant 48 : index
    %c0_132 = arith.constant 0 : index
    %128 = vector.load %arg14[%c48_131, %c0_132] : memref<288x256xbf16, #tpu.memory_space<vmem>>, vector<8x256xbf16>
    tpu.vector_store %arg14[%c48_131, %c0_132], %127 {strides = array<i32>} : memref<288x256xbf16, #tpu.memory_space<vmem>>, vector<8x256xbf16>,
    %c0_133 = arith.constant 0 : index
    %c129_134 = arith.constant 129 : index
    %129 = vector.load %arg13[%c0_133, %c129_134] : memref<32x512xbf16, #tpu.memory_space<vmem>>, vector<8x256xbf16>
    %130 = arith.mulf %129, %110 : vector<8x256xbf16>
    %c56 = arith.constant 56 : index
    %c0_135 = arith.constant 0 : index
    %131 = vector.load %arg14[%c56, %c0_135] : memref<288x256xbf16, #tpu.memory_space<vmem>>, vector<8x256xbf16>
    tpu.vector_store %arg14[%c56, %c0_135], %130 {strides = array<i32>} : memref<288x256xbf16, #tpu.memory_space<vmem>>, vector<8x256xbf16>,
    %c0_136 = arith.constant 0 : index
    %c145_137 = arith.constant 145 : index
    %132 = vector.load %arg13[%c0_136, %c145_137] : memref<32x512xbf16, #tpu.memory_space<vmem>>, vector<8x256xbf16>
    %133 = arith.mulf %132, %110 : vector<8x256xbf16>
    %c64_138 = arith.constant 64 : index
    %c0_139 = arith.constant 0 : index
    %134 = vector.load %arg14[%c64_138, %c0_139] : memref<288x256xbf16, #tpu.memory_space<vmem>>, vector<8x256xbf16>
    tpu.vector_store %arg14[%c64_138, %c0_139], %133 {strides = array<i32>} : memref<288x256xbf16, #tpu.memory_space<vmem>>, vector<8x256xbf16>,
    %c0_140 = arith.constant 0 : index
    %c0_141 = arith.constant 0 : index
    %135 = vector.load %arg8[%c0_140, %c0_141] : memref<8x72xbf16, #tpu.memory_space<vmem>>, vector<8x72xbf16>
    %c0_142 = arith.constant 0 : index
    %c0_143 = arith.constant 0 : index
    %136 = vector.load %arg14[%c0_142, %c0_143] : memref<288x256xbf16, #tpu.memory_space<vmem>>, vector<72x256xbf16>
    %cst_144 = arith.constant dense<0.000000e+00> : vector<8x256xf32>
    %137 = tpu.matmul %135, %136, %cst_144 {dimension_numbers = #tpu.dot_dimension_numbers<[1], [0], [0], [1], [0, 0, 1, 1], [], []>} : vector<8x72xbf16>, vector<72x256xbf16>, vector<8x256xf32> -> vector<8x256xf32>
    %c0_145 = arith.constant 0 : index
    %c0_146 = arith.constant 0 : index
    %138 = vector.load %arg9[%c0_145, %c0_146] : memref<8x1xf32, #tpu.memory_space<vmem>>, vector<8x1xf32>
    %139 = vector.broadcast %138 : vector<8x1xf32> to vector<8x256xf32>
    %140 = arith.addf %137, %139 : vector<8x256xf32>
    %cst_147 = arith.constant 0.000000e+00 : f32
    %141 = vector.broadcast %cst_147 : f32 to vector<8x256xf32>
    %142 = arith.maximumf %140, %141 : vector<8x256xf32>
    %c0_148 = arith.constant 0 : index
    %c56_149 = arith.constant 56 : index
    %c0_150 = arith.constant 0 : index
    %143 = vector.load %arg12[%c0_148, %c56_149, %c0_150] : memref<1x64x256xf32, #tpu.memory_space<vmem>>, vector<1x8x256xf32>
    %144 = vector.shape_cast %143 : vector<1x8x256xf32> to vector<8x256xf32>
    %145 = vector.shape_cast %142 : vector<8x256xf32> to vector<1x8x256xf32>
    tpu.vector_store %arg12[%c0_148, %c56_149, %c0_150], %145 {strides = array<i32>} : memref<1x64x256xf32, #tpu.memory_space<vmem>>, vector<1x8x256xf32>,
    return
  }
  func.func @transform_0(%arg0: i32) -> (i32, i32, i32) {
    %c0_i32 = arith.constant 0 : i32
    %c0_i32_0 = arith.constant 0 : i32
    %c0_i32_1 = arith.constant 0 : i32
    return %arg0, %c0_i32, %c0_i32_0 : i32, i32, i32
  }
  func.func @transform_1(%arg0: i32) -> (i32, i32) {
    %c0_i32 = arith.constant 0 : i32
    %c0_i32_0 = arith.constant 0 : i32
    %c0_i32_1 = arith.constant 0 : i32
    return %c0_i32, %c0_i32_0 : i32, i32
  }
  func.func @transform_2(%arg0: i32) -> (i32, i32) {
    %c0_i32 = arith.constant 0 : i32
    %c0_i32_0 = arith.constant 0 : i32
    %c0_i32_1 = arith.constant 0 : i32
    return %c0_i32, %c0_i32_0 : i32, i32
  }
  func.func @transform_3(%arg0: i32) -> (i32, i32) {
    %c0_i32 = arith.constant 0 : i32
    %c0_i32_0 = arith.constant 0 : i32
    %c0_i32_1 = arith.constant 0 : i32
    return %c0_i32, %c0_i32_0 : i32, i32
  }
  func.func @transform_4(%arg0: i32) -> (i32, i32) {
    %c0_i32 = arith.constant 0 : i32
    %c0_i32_0 = arith.constant 0 : i32
    %c0_i32_1 = arith.constant 0 : i32
    return %c0_i32, %c0_i32_0 : i32, i32
  }
  func.func @transform_5(%arg0: i32) -> (i32, i32) {
    %c0_i32 = arith.constant 0 : i32
    %c0_i32_0 = arith.constant 0 : i32
    %c0_i32_1 = arith.constant 0 : i32
    return %c0_i32, %c0_i32_0 : i32, i32
  }
  func.func @transform_6(%arg0: i32) -> (i32, i32) {
    %c0_i32 = arith.constant 0 : i32
    %c0_i32_0 = arith.constant 0 : i32
    %c0_i32_1 = arith.constant 0 : i32
    return %c0_i32, %c0_i32_0 : i32, i32
  }
  func.func @transform_7(%arg0: i32) -> (i32, i32) {
    %c0_i32 = arith.constant 0 : i32
    %c0_i32_0 = arith.constant 0 : i32
    %c0_i32_1 = arith.constant 0 : i32
    return %c0_i32, %c0_i32_0 : i32, i32
  }
  func.func @transform_8(%arg0: i32) -> (i32, i32) {
    %c0_i32 = arith.constant 0 : i32
    %c0_i32_0 = arith.constant 0 : i32
    %c0_i32_1 = arith.constant 0 : i32
    return %c0_i32, %c0_i32_0 : i32, i32
  }
  func.func @transform_9(%arg0: i32) -> (i32, i32) {
    %c0_i32 = arith.constant 0 : i32
    %c0_i32_0 = arith.constant 0 : i32
    %c0_i32_1 = arith.constant 0 : i32
    return %c0_i32, %c0_i32_0 : i32, i32
  }
  func.func @transform_10(%arg0: i32) -> (i32, i32) {
    %c0_i32 = arith.constant 0 : i32
    %c0_i32_0 = arith.constant 0 : i32
    %c0_i32_1 = arith.constant 0 : i32
    return %c0_i32, %c0_i32_0 : i32, i32
  }
  func.func @transform_11(%arg0: i32) -> (i32, i32, i32) {
    %c0_i32 = arith.constant 0 : i32
    %c0_i32_0 = arith.constant 0 : i32
    %c0_i32_1 = arith.constant 0 : i32
    return %arg0, %c0_i32, %c0_i32_0 : i32, i32, i32
  }
}

</mosaic_0001>

<llo_original>
// kernel: tpu_custom_call.1
$region0: #{tpu_custom_call.1}
  #allocation0 [shape = 'u32[]', space=smem, size = 0x4, offset = 0x4, fixed_abs, tag = 'smem constant byte address 0x4 - core index']
  #allocation1 [shape = 'u32[144,128]{1,0:T(1,128)}', space=vmem, size = 0x12000, scoped, tag = 'internal scratch']
  #allocation2 [shape = 'bf16[32,512]{1,0:T(16,128)(2,1)}', space=vmem, size = 0x8000, scoped, tag = 'scratch operand']
  #allocation3 [shape = 'bf16[288,256]{1,0:T(16,128)(2,1)}', space=vmem, size = 0x24000, scoped, tag = 'scratch operand']
  %s0 = inlined_call_operand.vmem [shape: f32[2,16,256], index: 0, kind: input, shape index: {}]
  %s1 = inlined_call_operand.vmem [shape: bf16[32,16], index: 1, kind: input, shape index: {}]
  %s2 = inlined_call_operand.vmem [shape: f32[32,1], index: 2, kind: input, shape index: {}]
  %s3 = inlined_call_operand.vmem [shape: bf16[16,288], index: 3, kind: input, shape index: {}]
  %s4 = inlined_call_operand.vmem [shape: f32[16,1], index: 4, kind: input, shape index: {}]
  %s5 = inlined_call_operand.vmem [shape: bf16[8,144], index: 5, kind: input, shape index: {}]
  %s6 = inlined_call_operand.vmem [shape: f32[8,1], index: 6, kind: input, shape index: {}]
  %s7 = inlined_call_operand.vmem [shape: bf16[8,72], index: 7, kind: input, shape index: {}]
  %s8 = inlined_call_operand.vmem [shape: f32[8,1], index: 8, kind: input, shape index: {}]
  %s9 = inlined_call_operand.vmem [shape: bf16[1,256], index: 9, kind: input, shape index: {}]
  %s10 = inlined_call_operand.vmem [shape: bf16[1,256], index: 10, kind: input, shape index: {}]
  %s11 = inlined_call_operand.hbm [shape: f32[2,64,256], index: 11, kind: output, shape index: {}]
  %s12 = sld [smem:[#allocation0]]
  $region77: #{tpu_custom_call.1} parent=0
    _
  %s14 = ssub.s32 1, %s12
  %s15 = scalar_select 0, %s14, %s12
  $region1: #{tpu_custom_call.1} parent=0
    #allocation4 [shape = 'u8[131072]{0}', space=vmem, size = 0x20000, scoped, tag = 'output window, operand 0']
    #allocation5 [shape = 's32[2]{0}', space=sflag, size = 0x8, scoped, tag = 'scoped memory for tpu_custom_call.1']
    %16 = vsyncpa [#allocation5], 0
    %s17 = scalar_lea.sflag [#allocation5], 1
    %18 = vsyncpa %s17, 0
    loop: start=0, step=1, limit=4
    $region2: #{tpu_custom_call.1} parent=1 // loop_pre_header
      _
    $region3: #{tpu_custom_call.1} parent=1 // loop_header
      %s20 = sphi 0, %s24
      %p21 = scmp.ge.s32.totalorder %s20, 4
      %s30 = sphi 0, %s32
      %s33 = sphi 0, %s30
      %s34 = sphi 0, %s33
      %s50 = sphi 0, %s34
      %s54 = sphi 0, %s54
      %s56 = sphi 0, %s54
      %s57 = sphi 0, %s56
      %s71 = sphi 0, %s57
      %s75 = sphi 0, %s75
      %s77 = sphi 0, %s75
      %s78 = sphi 0, %s77
      %s92 = sphi 0, %s78
      %s96 = sphi 0, %s96
      %s98 = sphi 0, %s96
      %s99 = sphi 0, %s98
      %s113 = sphi 0, %s99
      %s117 = sphi 0, %s117
      %s119 = sphi 0, %s117
      %s120 = sphi 0, %s119
      %s134 = sphi 0, %s120
      %s138 = sphi 0, %s138
      %s140 = sphi 0, %s138
      %s141 = sphi 0, %s140
      %s155 = sphi 0, %s141
      %s159 = sphi 0, %s159
      %s161 = sphi 0, %s159
      %s162 = sphi 0, %s161
      %s176 = sphi 0, %s162
      %s180 = sphi 0, %s180
      %s182 = sphi 0, %s180
      %s183 = sphi 0, %s182
      %s197 = sphi 0, %s183
      %s201 = sphi 0, %s201
      %s203 = sphi 0, %s201
      %s204 = sphi 0, %s203
      %s218 = sphi 0, %s204
      %s222 = sphi 0, %s222
      %s224 = sphi 0, %s222
      %s225 = sphi 0, %s224
      %s239 = sphi 0, %s225
      %s243 = sphi 0, %s243
      %s245 = sphi 0, %s243
      %s246 = sphi 0, %s245
      %s260 = sphi 0, %s246
      %s266 = sphi 0, %s268
      %s269 = sphi 0, %s266
      %s270 = sphi 0, %s269
      %s286 = sphi 0, %s270
    $region4: #{tpu_custom_call.1} parent=1 // loop_header_branch
      %23 = sbr.rel (%p21) target = $region8
    $region5: #{tpu_custom_call.1} parent=1 // loop_body
      %s25 = ssub.s32 %s20, 1
      %s26 = ssub.s32 %s20, 2
      %s27 = sadd.s32 %s20, 1
      %s28 = ssub.s32 %s20, %s27
      %p29 = scmp.eq.s32.totalorder %s28, 0
      %s31 = sadd.s32 %s30, 1
      %s32 = scalar_select %p29, %s30, %s31
      %p35 = pneg %p29
      %p36 = scmp.eq.s32.totalorder %s20, 1
      %p37 = por %p35, %p36
      %p38 = scmp.ne.s32.totalorder %s30, %s33
      %p39 = scmp.eq.s32.totalorder %s20, 0
      %p40 = por %p38, %p39
      %p41 = scmp.ne.s32.totalorder %s30, %s33
      %p42 = scmp.eq.s32.totalorder %s25, 1
      %p43 = por %p41, %p42
      %p44 = scmp.ne.s32.totalorder %s33, %s34
      %p45 = scmp.eq.s32.totalorder %s25, 0
      %p46 = por %p44, %p45
      %p47 = scmp.ne.s32.totalorder %s33, %s34
      %p48 = scmp.eq.s32.totalorder %s26, 1
      %p49 = por %p47, %p48
      %p51 = scmp.ne.s32.totalorder %s34, %s50
      %p52 = scmp.eq.s32.totalorder %s26, 0
      %p53 = por %p51, %p52
      %s55 = sadd.s32 %s54, 1
      %p58 = scmp.eq.s32.totalorder %s20, 1
      %p59 = scmp.ne.s32.totalorder %s54, %s56
      %p60 = scmp.eq.s32.totalorder %s20, 0
      %p61 = por %p59, %p60
      %p62 = scmp.ne.s32.totalorder %s54, %s56
      %p63 = scmp.eq.s32.totalorder %s25, 1
      %p64 = por %p62, %p63
      %p65 = scmp.ne.s32.totalorder %s56, %s57
      %p66 = scmp.eq.s32.totalorder %s25, 0
      %p67 = por %p65, %p66
      %p68 = scmp.ne.s32.totalorder %s56, %s57
      %p69 = scmp.eq.s32.totalorder %s26, 1
      %p70 = por %p68, %p69
      %p72 = scmp.ne.s32.totalorder %s57, %s71
      %p73 = scmp.eq.s32.totalorder %s26, 0
      %p74 = por %p72, %p73
      %s76 = sadd.s32 %s75, 1
      %p79 = scmp.eq.s32.totalorder %s20, 1
      %p80 = scmp.ne.s32.totalorder %s75, %s77
      %p81 = scmp.eq.s32.totalorder %s20, 0
      %p82 = por %p80, %p81
      %p83 = scmp.ne.s32.totalorder %s75, %s77
      %p84 = scmp.eq.s32.totalorder %s25, 1
      %p85 = por %p83, %p84
      %p86 = scmp.ne.s32.totalorder %s77, %s78
      %p87 = scmp.eq.s32.totalorder %s25, 0
      %p88 = por %p86, %p87
      %p89 = scmp.ne.s32.totalorder %s77, %s78
      %p90 = scmp.eq.s32.totalorder %s26, 1
      %p91 = por %p89, %p90
      %p93 = scmp.ne.s32.totalorder %s78, %s92
      %p94 = scmp.eq.s32.totalorder %s26, 0
      %p95 = por %p93, %p94
      %s97 = sadd.s32 %s96, 1
      %p100 = scmp.eq.s32.totalorder %s20, 1
      %p101 = scmp.ne.s32.totalorder %s96, %s98
      %p102 = scmp.eq.s32.totalorder %s20, 0
      %p103 = por %p101, %p102
      %p104 = scmp.ne.s32.totalorder %s96, %s98
      %p105 = scmp.eq.s32.totalorder %s25, 1
      %p106 = por %p104, %p105
      %p107 = scmp.ne.s32.totalorder %s98, %s99
      %p108 = scmp.eq.s32.totalorder %s25, 0
      %p109 = por %p107, %p108
      %p110 = scmp.ne.s32.totalorder %s98, %s99
      %p111 = scmp.eq.s32.totalorder %s26, 1
      %p112 = por %p110, %p111
      %p114 = scmp.ne.s32.totalorder %s99, %s113
      %p115 = scmp.eq.s32.totalorder %s26, 0
      %p116 = por %p114, %p115
      %s118 = sadd.s32 %s117, 1
      %p121 = scmp.eq.s32.totalorder %s20, 1
      %p122 = scmp.ne.s32.totalorder %s117, %s119
      %p123 = scmp.eq.s32.totalorder %s20, 0
      %p124 = por %p122, %p123
      %p125 = scmp.ne.s32.totalorder %s117, %s119
      %p126 = scmp.eq.s32.totalorder %s25, 1
      %p127 = por %p125, %p126
      %p128 = scmp.ne.s32.totalorder %s119, %s120
      %p129 = scmp.eq.s32.totalorder %s25, 0
      %p130 = por %p128, %p129
      %p131 = scmp.ne.s32.totalorder %s119, %s120
      %p132 = scmp.eq.s32.totalorder %s26, 1
      %p133 = por %p131, %p132
      %p135 = scmp.ne.s32.totalorder %s120, %s134
      %p136 = scmp.eq.s32.totalorder %s26, 0
      %p137 = por %p135, %p136
      %s139 = sadd.s32 %s138, 1
      %p142 = scmp.eq.s32.totalorder %s20, 1
      %p143 = scmp.ne.s32.totalorder %s138, %s140
      %p144 = scmp.eq.s32.totalorder %s20, 0
      %p145 = por %p143, %p144
      %p146 = scmp.ne.s32.totalorder %s138, %s140
      %p147 = scmp.eq.s32.totalorder %s25, 1
      %p148 = por %p146, %p147
      %p149 = scmp.ne.s32.totalorder %s140, %s141
      %p150 = scmp.eq.s32.totalorder %s25, 0
      %p151 = por %p149, %p150
      %p152 = scmp.ne.s32.totalorder %s140, %s141
      %p153 = scmp.eq.s32.totalorder %s26, 1
      %p154 = por %p152, %p153
      %p156 = scmp.ne.s32.totalorder %s141, %s155
      %p157 = scmp.eq.s32.totalorder %s26, 0
      %p158 = por %p156, %p157
      %s160 = sadd.s32 %s159, 1
      %p163 = scmp.eq.s32.totalorder %s20, 1
      %p164 = scmp.ne.s32.totalorder %s159, %s161
      %p165 = scmp.eq.s32.totalorder %s20, 0
      %p166 = por %p164, %p165
      %p167 = scmp.ne.s32.totalorder %s159, %s161
      %p168 = scmp.eq.s32.totalorder %s25, 1
      %p169 = por %p167, %p168
      %p170 = scmp.ne.s32.totalorder %s161, %s162
      %p171 = scmp.eq.s32.totalorder %s25, 0
      %p172 = por %p170, %p171
      %p173 = scmp.ne.s32.totalorder %s161, %s162
      %p174 = scmp.eq.s32.totalorder %s26, 1
      %p175 = por %p173, %p174
      %p177 = scmp.ne.s32.totalorder %s162, %s176
      %p178 = scmp.eq.s32.totalorder %s26, 0
      %p179 = por %p177, %p178
      %s181 = sadd.s32 %s180, 1
      %p184 = scmp.eq.s32.totalorder %s20, 1
      %p185 = scmp.ne.s32.totalorder %s180, %s182
      %p186 = scmp.eq.s32.totalorder %s20, 0
      %p187 = por %p185, %p186
      %p188 = scmp.ne.s32.totalorder %s180, %s182
      %p189 = scmp.eq.s32.totalorder %s25, 1
      %p190 = por %p188, %p189
      %p191 = scmp.ne.s32.totalorder %s182, %s183
      %p192 = scmp.eq.s32.totalorder %s25, 0
      %p193 = por %p191, %p192
      %p194 = scmp.ne.s32.totalorder %s182, %s183
      %p195 = scmp.eq.s32.totalorder %s26, 1
      %p196 = por %p194, %p195
      %p198 = scmp.ne.s32.totalorder %s183, %s197
      %p199 = scmp.eq.s32.totalorder %s26, 0
      %p200 = por %p198, %p199
      %s202 = sadd.s32 %s201, 1
      %p205 = scmp.eq.s32.totalorder %s20, 1
      %p206 = scmp.ne.s32.totalorder %s201, %s203
      %p207 = scmp.eq.s32.totalorder %s20, 0
      %p208 = por %p206, %p207
      %p209 = scmp.ne.s32.totalorder %s201, %s203
      %p210 = scmp.eq.s32.totalorder %s25, 1
      %p211 = por %p209, %p210
      %p212 = scmp.ne.s32.totalorder %s203, %s204
      %p213 = scmp.eq.s32.totalorder %s25, 0
      %p214 = por %p212, %p213
      %p215 = scmp.ne.s32.totalorder %s203, %s204
      %p216 = scmp.eq.s32.totalorder %s26, 1
      %p217 = por %p215, %p216
      %p219 = scmp.ne.s32.totalorder %s204, %s218
      %p220 = scmp.eq.s32.totalorder %s26, 0
      %p221 = por %p219, %p220
      %s223 = sadd.s32 %s222, 1
      %p226 = scmp.eq.s32.totalorder %s20, 1
      %p227 = scmp.ne.s32.totalorder %s222, %s224
      %p228 = scmp.eq.s32.totalorder %s20, 0
      %p229 = por %p227, %p228
      %p230 = scmp.ne.s32.totalorder %s222, %s224
      %p231 = scmp.eq.s32.totalorder %s25, 1
      %p232 = por %p230, %p231
      %p233 = scmp.ne.s32.totalorder %s224, %s225
      %p234 = scmp.eq.s32.totalorder %s25, 0
      %p235 = por %p233, %p234
      %p236 = scmp.ne.s32.totalorder %s224, %s225
      %p237 = scmp.eq.s32.totalorder %s26, 1
      %p238 = por %p236, %p237
      %p240 = scmp.ne.s32.totalorder %s225, %s239
      %p241 = scmp.eq.s32.totalorder %s26, 0
      %p242 = por %p240, %p241
      %s244 = sadd.s32 %s243, 1
      %p247 = scmp.eq.s32.totalorder %s20, 1
      %p248 = scmp.ne.s32.totalorder %s243, %s245
      %p249 = scmp.eq.s32.totalorder %s20, 0
      %p250 = por %p248, %p249
      %p251 = scmp.ne.s32.totalorder %s243, %s245
      %p252 = scmp.eq.s32.totalorder %s25, 1
      %p253 = por %p251, %p252
      %p254 = scmp.ne.s32.totalorder %s245, %s246
      %p255 = scmp.eq.s32.totalorder %s25, 0
      %p256 = por %p254, %p255
      %p257 = scmp.ne.s32.totalorder %s245, %s246
      %p258 = scmp.eq.s32.totalorder %s26, 1
      %p259 = por %p257, %p258
      %p261 = scmp.ne.s32.totalorder %s246, %s260
      %p262 = scmp.eq.s32.totalorder %s26, 0
      %p263 = por %p261, %p262
      %s264 = ssub.s32 %s20, %s27
      %p265 = scmp.eq.s32.totalorder %s264, 0
      %s267 = sadd.s32 %s266, 1
      %s268 = scalar_select %p265, %s266, %s267
      %p271 = pneg %p265
      %p272 = scmp.eq.s32.totalorder %s20, 1
      %p273 = por %p271, %p272
      %p274 = scmp.ne.s32.totalorder %s266, %s269
      %p275 = scmp.eq.s32.totalorder %s20, 0
      %p276 = por %p274, %p275
      %p277 = scmp.ne.s32.totalorder %s266, %s269
      %p278 = scmp.eq.s32.totalorder %s25, 1
      %p279 = por %p277, %p278
      %p280 = scmp.ne.s32.totalorder %s269, %s270
      %p281 = scmp.eq.s32.totalorder %s25, 0
      %p282 = por %p280, %p281
      %p283 = scmp.ne.s32.totalorder %s269, %s270
      %p284 = scmp.eq.s32.totalorder %s26, 1
      %p285 = por %p283, %p284
      %p287 = scmp.ne.s32.totalorder %s270, %s286
      %p288 = scmp.eq.s32.totalorder %s26, 0
      %p289 = por %p287, %p288
      %p290 = scmp.le.s32.totalorder 1, %s20
      %p291 = scmp.lt.s32.totalorder %s20, 3
      %p292 = pnand %p290, %p291
      %p293 = pneg %p292
      // Predicated region
      $region9: #{tpu_custom_call.1} parent=5 // pred_check
        _
      $region10: #{tpu_custom_call.1} parent=5 // pred_check_branch
        %295 = sbr.rel (%p292) target = $region12
      $region11: #{tpu_custom_call.1} parent=5 // pred_region
        %s296 = ssub.s32 %s20, 1
        // Predicated region
        $region13: #{tpu_custom_call.1} parent=11 // pred_check
          %p297 = pneg %p67
        $region14: #{tpu_custom_call.1} parent=11 // pred_check_branch
          %299 = sbr.rel (%p297) target = $region16
        $region15: #{tpu_custom_call.1} parent=11 // pred_region
          _
        $region16: #{tpu_custom_call.1} parent=11 // pred_fallthru
          _
        // Predicated region
        $region17: #{tpu_custom_call.1} parent=11 // pred_check
          %p300 = pneg %p88
        $region18: #{tpu_custom_call.1} parent=11 // pred_check_branch
          %302 = sbr.rel (%p300) target = $region20
        $region19: #{tpu_custom_call.1} parent=11 // pred_region
          _
        $region20: #{tpu_custom_call.1} parent=11 // pred_fallthru
          _
        // Predicated region
        $region21: #{tpu_custom_call.1} parent=11 // pred_check
          %p303 = pneg %p109
        $region22: #{tpu_custom_call.1} parent=11 // pred_check_branch
          %305 = sbr.rel (%p303) target = $region24
        $region23: #{tpu_custom_call.1} parent=11 // pred_region
          _
        $region24: #{tpu_custom_call.1} parent=11 // pred_fallthru
          _
        // Predicated region
        $region25: #{tpu_custom_call.1} parent=11 // pred_check
          %p306 = pneg %p130
        $region26: #{tpu_custom_call.1} parent=11 // pred_check_branch
          %308 = sbr.rel (%p306) target = $region28
        $region27: #{tpu_custom_call.1} parent=11 // pred_region
          _
        $region28: #{tpu_custom_call.1} parent=11 // pred_fallthru
          _
        // Predicated region
        $region29: #{tpu_custom_call.1} parent=11 // pred_check
          %p309 = pneg %p151
        $region30: #{tpu_custom_call.1} parent=11 // pred_check_branch
          %311 = sbr.rel (%p309) target = $region32
        $region31: #{tpu_custom_call.1} parent=11 // pred_region
          _
        $region32: #{tpu_custom_call.1} parent=11 // pred_fallthru
          _
        // Predicated region
        $region33: #{tpu_custom_call.1} parent=11 // pred_check
          %p312 = pneg %p172
        $region34: #{tpu_custom_call.1} parent=11 // pred_check_branch
          %314 = sbr.rel (%p312) target = $region36
        $region35: #{tpu_custom_call.1} parent=11 // pred_region
          _
        $region36: #{tpu_custom_call.1} parent=11 // pred_fallthru
          _
        // Predicated region
        $region37: #{tpu_custom_call.1} parent=11 // pred_check
          %p315 = pneg %p193
        $region38: #{tpu_custom_call.1} parent=11 // pred_check_branch
          %317 = sbr.rel (%p315) target = $region40
        $region39: #{tpu_custom_call.1} parent=11 // pred_region
          _
        $region40: #{tpu_custom_call.1} parent=11 // pred_fallthru
          _
        // Predicated region
        $region41: #{tpu_custom_call.1} parent=11 // pred_check
          %p318 = pneg %p214
        $region42: #{tpu_custom_call.1} parent=11 // pred_check_branch
          %320 = sbr.rel (%p318) target = $region44
        $region43: #{tpu_custom_call.1} parent=11 // pred_region
          _
        $region44: #{tpu_custom_call.1} parent=11 // pred_fallthru
          _
        // Predicated region
        $region45: #{tpu_custom_call.1} parent=11 // pred_check
          %p321 = pneg %p235
        $region46: #{tpu_custom_call.1} parent=11 // pred_check_branch
          %323 = sbr.rel (%p321) target = $region48
        $region47: #{tpu_custom_call.1} parent=11 // pred_region
          _
        $region48: #{tpu_custom_call.1} parent=11 // pred_fallthru
          _
        // Predicated region
        $region49: #{tpu_custom_call.1} parent=11 // pred_check
          %p324 = pneg %p256
        $region50: #{tpu_custom_call.1} parent=11 // pred_check_branch
          %326 = sbr.rel (%p324) target = $region52
        $region51: #{tpu_custom_call.1} parent=11 // pred_region
          _
        $region52: #{tpu_custom_call.1} parent=11 // pred_fallthru
          _
      $region12: #{tpu_custom_call.1} parent=5 // pred_fallthru
        _
      %p327 = scmp.lt.s32.totalorder %s20, 2
      // Predicated region
      $region53: #{tpu_custom_call.1} parent=5 // pred_check
        %p328 = pneg %p327
      $region54: #{tpu_custom_call.1} parent=5 // pred_check_branch
        %330 = sbr.rel (%p328) target = $region56
      $region55: #{tpu_custom_call.1} parent=5 // pred_region
        // Predicated region
        $region57: #{tpu_custom_call.1} parent=55 // pred_check
          %p331 = pneg %p40
        $region58: #{tpu_custom_call.1} parent=55 // pred_check_branch
          %333 = sbr.rel (%p331) target = $region60
        $region59: #{tpu_custom_call.1} parent=55 // pred_region
          %p334 = scmp.lt.s32.totalorder %s20, 1
          %s335 = scalar_select %p334, %s20, 1
          %s336 = smul.addr %s335, 4
          %s337 = smul.addr %s336, 8
          %s338 = scalar_lea.vmem %s0, %s337
        $region60: #{tpu_custom_call.1} parent=55 // pred_fallthru
          _
      $region56: #{tpu_custom_call.1} parent=5 // pred_fallthru
        _
      %p339 = scmp.le.s32.totalorder 1, %s20
      %p340 = scmp.lt.s32.totalorder %s20, 3
      %p341 = pnand %p339, %p340
      %p342 = pneg %p341
      // Predicated region
      $region61: #{tpu_custom_call.1} parent=5 // pred_check
        _
      $region62: #{tpu_custom_call.1} parent=5 // pred_check_branch
        %344 = sbr.rel (%p341) target = $region64
      $region63: #{tpu_custom_call.1} parent=5 // pred_region
        %s345 = ssub.s32 %s20, 1
        %p346 = scmp.lt.s32.totalorder %s25, 1
        %s347 = scalar_select %p346, %s25, 1
        %s348 = smul.addr %s347, 4
        %s349 = smul.addr %s348, 8
        %s350 = scalar_lea.vmem %s0, %s349
        %p351 = pneg %p46
        %p352 = pneg %p43
        %p353 = pneg %p67
        %p354 = pneg %p64
        %p355 = pneg %p88
        %p356 = pneg %p85
        %p357 = pneg %p109
        %p358 = pneg %p106
        %p359 = pneg %p130
        %p360 = pneg %p127
        %p361 = pneg %p151
        %p362 = pneg %p148
        %p363 = pneg %p172
        %p364 = pneg %p169
        %p365 = pneg %p193
        %p366 = pneg %p190
        %p367 = pneg %p214
        %p368 = pneg %p211
        %p369 = pneg %p235
        %p370 = pneg %p232
        %p371 = pneg %p256
        %p372 = pneg %p253
        %p373 = pneg %p282
        %p374 = pneg %p279
        %s375 = sand.u32 %s269, 1
        %s376 = scalar_lea.sflag [#allocation5], %s375
        %s377 = sand.u32 %s269, 1
        %s378 = smul.addr %s377, 128
        %s379 = scalar_lea.vmem [#allocation4], %s378
        %p380 = scmp.lt.s32.totalorder %s25, 1
        %s381 = scalar_select %p380, %s25, 1
        %s382 = smul.addr %s381, 4
        %s383 = smul.addr %s382, 8
        %s384 = scalar_lea.vmem %s0, %s383
        %386 = vst [vmem:[#allocation2] sm:$0xff] 0
        %387 = vst [vmem:[#allocation2 + $0x20] sm:$0xff] 0
        %388 = vst [vmem:[#allocation2 + $0x18] sm:$0xff] 0
        %389 = vst [vmem:[#allocation2 + $0x38] sm:$0xff] 0
        %v390 = vld [vmem:[%s384] sm:$0xff]
        %v391 = vld [vmem:[%s384 + $0x8] sm:$0xff]
        %v392 = vld [vmem:[%s384 + $0x10] sm:$0xff]
        %v393 = vld [vmem:[%s384 + $0x18] sm:$0xff]
        %v394 = vpack.c.bf16 %v392, %v390
        %v395 = vpack.c.bf16 %v393, %v391
        %v396 = vld [vmem:[%s1] sm:$0xf]
        %v397 = vld [vmem:[%s1 + $0x4] sm:$0xf]
        %v398 = vld [vmem:[%s1 + $0x8] sm:$0xf]
        %v399 = vld [vmem:[%s1 + $0xc] sm:$0xf]
        %v400 = vld [vmem:[%s2] sm:$0xff]
        %v401 = vld [vmem:[%s2 + $0x8] sm:$0xff]
        %v402 = vld [vmem:[%s2 + $0x10] sm:$0xff]
        %v403 = vld [vmem:[%s2 + $0x18] sm:$0xff]
        %405 = vset.pattern.permute.xlu0 0
        %406 = vperm.xlu0 %405, %v400
        %v407 = vpop.permute.xlu0 %406
        %410 = vset.pattern.permute.xlu0 0
        %411 = vperm.xlu0 %410, %v401
        %v412 = vpop.permute.xlu0 %411
        %415 = vset.pattern.permute.xlu0 0
        %416 = vperm.xlu0 %415, %v402
        %v417 = vpop.permute.xlu0 %416
        %420 = vset.pattern.permute.xlu0 0
        %421 = vperm.xlu0 %420, %v403
        %v422 = vpop.permute.xlu0 %421
        %v428 = vunpack.c.l.b16 %v396
        %v429 = vunpack.c.l.b16 %v397
        %v430 = vunpack.c.l.b16 %v398
        %v431 = vunpack.c.l.b16 %v399
        %v432 = vpack.c.b16 %v429, %v428
        %v433 = vpack.c.b16 %v431, %v430
        %vm434 = vcmask 130048
        %v436 = vsel %vm434, %v432, 0
        %v439 = vsel %vm434, %v433, 0
        %441 = vmatprep.subr.bf16.mxu0 %v395
        %442 = vmatpush1.bf16.msra.mxu0 %v394
        %443 = vmatprep.subr.bf16.mxu0 0
        %444 = vmatpush1.bf16.msra.mxu0 0
        %445 = vmatprep.subr.bf16.mxu0 0
        %446 = vmatpush1.bf16.msra.mxu0 0
        %447 = vmatprep.subr.bf16.mxu0 0
        %448 = vmatpush1.bf16.msra.mxu0 0
        %449 = vmatprep.subr.bf16.mxu0 0
        %450 = vmatpush1.bf16.msra.mxu0 0
        %451 = vmatprep.subr.bf16.mxu0 0
        %452 = vmatpush1.bf16.msra.mxu0 0
        %453 = vmatprep.subr.bf16.mxu0 0
        %454 = vmatpush1.bf16.msra.mxu0 0
        %455 = vmatprep.subr.bf16.mxu0 0
        %456 = vmatpush1.bf16.msra.mxu0 0
        %457 = vmatprep.subr.bf16.mxu0 0
        %458 = vmatpush1.bf16.msra.mxu0 0
        %459 = vmatprep.subr.bf16.mxu0 0
        %460 = vmatpush1.bf16.msra.mxu0 0
        %461 = vmatprep.subr.bf16.mxu0 0
        %462 = vmatpush1.bf16.msra.mxu0 0
        %463 = vmatprep.subr.bf16.mxu0 0
        %464 = vmatpush1.bf16.msra.mxu0 0
        %465 = vmatprep.subr.bf16.mxu0 0
        %466 = vmatpush1.bf16.msra.mxu0 0
        %467 = vmatprep.subr.bf16.mxu0 0
        %468 = vmatpush1.bf16.msra.mxu0 0
        %469 = vmatprep.subr.bf16.mxu0 0
        %470 = vmatpush1.bf16.msra.mxu0 0
        %471 = vmatprep.subr.bf16.mxu0 0
        %472 = vmatpush1.bf16.msra.mxu0 0
        %473 = vmatprep.mubr.bf16.mxu0 0
        %474 = vmatmul.mubr.bf16.gmra.mrb[0].mxu0 %v436
        %v475 = vpop.f32.mrb[0].mxu0
        %v476 = vadd.f32 %v407, %v475
        %v477 = vpop.f32.mrb[0].mxu0
        %v478 = vadd.f32 %v407, %v477
        %v479 = vpop.f32.mrb[0].mxu0
        %v480 = vadd.f32 %v412, %v479
        %v481 = vpop.f32.mrb[0].mxu0
        %v482 = vadd.f32 %v412, %v481
        %483 = vmatprep.mubr.bf16.mxu0 0
        %484 = vmatmul.mubr.bf16.gmra.mrb[0].mxu0 %v439
        %v485 = vpop.f32.mrb[0].mxu0
        %v486 = vadd.f32 %v417, %v485
        %v487 = vpop.f32.mrb[0].mxu0
        %v488 = vadd.f32 %v417, %v487
        %v489 = vpop.f32.mrb[0].mxu0
        %v490 = vadd.f32 %v422, %v489
        %v491 = vpop.f32.mrb[0].mxu0
        %v492 = vadd.f32 %v422, %v491
        %493 = vdwg.mxu0
        %v494 = vmax.f32 %v476, 0.0
        %v495 = vmax.f32 %v478, 0.0
        %v496 = vmax.f32 %v480, 0.0
        %v497 = vmax.f32 %v482, 0.0
        %v498 = vmax.f32 %v486, 0.0
        %v499 = vmax.f32 %v488, 0.0
        %v500 = vmax.f32 %v490, 0.0
        %v501 = vmax.f32 %v492, 0.0
        %502 = vst [vmem:[%s379] sm:$0xff] %v494
        %503 = vst [vmem:[%s379 + $0x8] sm:$0xff] %v495
        %504 = vst [vmem:[%s379 + $0x10] sm:$0xff] %v496
        %505 = vst [vmem:[%s379 + $0x18] sm:$0xff] %v497
        %506 = vst [vmem:[%s379 + $0x20] sm:$0xff] %v498
        %507 = vst [vmem:[%s379 + $0x28] sm:$0xff] %v499
        %508 = vst [vmem:[%s379 + $0x30] sm:$0xff] %v500
        %509 = vst [vmem:[%s379 + $0x38] sm:$0xff] %v501
        %v510 = vpack.c.bf16 %v496, %v494
        %v511 = vpack.c.bf16 %v497, %v495
        %v512 = vpack.c.bf16 %v500, %v498
        %v513 = vpack.c.bf16 %v501, %v499
        %514 = vst [vmem:[#allocation2 + $0x8] sm:$0xff] %v510
        %515 = vst [vmem:[#allocation2 + $0x10] sm:$0xff] %v511
        %516 = vst [vmem:[#allocation2 + $0x28] sm:$0xff] %v512
        %517 = vst [vmem:[#allocation2 + $0x30] sm:$0xff] %v513
        %v518 = vld [vmem:[%s9] sm:$0x3]
        %v521 = vunpack.c.l.s4 1966171168
        %v522 = vunpack.c.0.s8 %v521
        %v523 = vlaneseq
        %v524 = vshrl.u32 %v523, 7
        %v525 = vsub.s32 %v522, %v524
        %v526 = vrot.slane %v518, %v525
        %v527 = vcombine.high %v526, %v526
        %v529 = vunpack.c.l.s4 1966171168
        %v530 = vunpack.c.0.s8 %v529
        %v531 = vlaneseq
        %v532 = vshrl.u32 %v531, 7
        %v533 = vsub.s32 %v530, %v532
        %v534 = vrot.slane %v526, %v533
        %v536 = vunpack.c.l.s4 1966171168
        %v537 = vunpack.c.0.s8 %v536
        %v538 = vlaneseq
        %v539 = vshrl.u32 %v538, 7
        %v540 = vsub.s32 %v537, %v539
        %v541 = vrot.slane %v527, %v540
        %v543 = vpack.i.b16 %v534, %v534
        %v545 = vlaneseq
        %v546 = vshrl.u32 %v545, 7
        %v547 = vsub.s32 0, %v546
        %v548 = vrot.slane %v543, %v547
        %v550 = vpack.i.b16 %v541, %v541
        %v552 = vlaneseq
        %v553 = vshrl.u32 %v552, 7
        %v554 = vsub.s32 0, %v553
        %v555 = vrot.slane %v550, %v554
        %v556 = vld [vmem:[%s10] sm:$0x3]
        %v559 = vunpack.c.l.s4 1966171168
        %v560 = vunpack.c.0.s8 %v559
        %v561 = vlaneseq
        %v562 = vshrl.u32 %v561, 7
        %v563 = vsub.s32 %v560, %v562
        %v564 = vrot.slane %v556, %v563
        %v565 = vcombine.high %v564, %v564
        %v567 = vunpack.c.l.s4 1966171168
        %v568 = vunpack.c.0.s8 %v567
        %v569 = vlaneseq
        %v570 = vshrl.u32 %v569, 7
        %v571 = vsub.s32 %v568, %v570
        %v572 = vrot.slane %v564, %v571
        %v574 = vunpack.c.l.s4 1966171168
        %v575 = vunpack.c.0.s8 %v574
        %v576 = vlaneseq
        %v577 = vshrl.u32 %v576, 7
        %v578 = vsub.s32 %v575, %v577
        %v579 = vrot.slane %v565, %v578
        %v581 = vpack.i.b16 %v572, %v572
        %v583 = vlaneseq
        %v584 = vshrl.u32 %v583, 7
        %v585 = vsub.s32 0, %v584
        %v586 = vrot.slane %v581, %v585
        %v588 = vpack.i.b16 %v579, %v579
        %v590 = vlaneseq
        %v591 = vshrl.u32 %v590, 7
        %v592 = vsub.s32 0, %v591
        %v593 = vrot.slane %v588, %v592
        %v594 = vld [vmem:[#allocation2] sm:$0xff]
        %v595 = vld [vmem:[#allocation2 + $0x8] sm:$0xff]
        %v596 = vld [vmem:[#allocation2 + $0x10] sm:$0xff]
        %v597 = vld [vmem:[#allocation2 + $0x20] sm:$0xff]
        %v598 = vld [vmem:[#allocation2 + $0x28] sm:$0xff]
        %v599 = vld [vmem:[#allocation2 + $0x30] sm:$0xff]
        %602 = vrot.lane.b32.xlu0 %v548, 111
        %v603 = vpop.permute.xlu0 %602
        %604 = vrot.lane.b32.xlu0 %v555, 111
        %v605 = vpop.permute.xlu0 %604
        %vm606 = vcmask 908288
        %v607 = vsel %vm606, %v603, %v605
        %v611 = vmul.bf16 %v594, %v603
        %v612 = vmul.bf16 %v595, %v607
        %v613 = vmul.bf16 %v596, %v605
        %v614 = vmul.bf16 %v597, %v603
        %v615 = vmul.bf16 %v598, %v607
        %v616 = vmul.bf16 %v599, %v605
        %623 = vrot.lane.b32.xlu0 %v611, 17
        %v624 = vpop.permute.xlu0 %623
        %625 = vrot.lane.b32.xlu0 %v612, 17
        %v626 = vpop.permute.xlu0 %625
        %627 = vrot.lane.b32.xlu0 %v613, 17
        %v628 = vpop.permute.xlu0 %627
        %629 = vrot.lane.b32.xlu0 %v614, 17
        %v630 = vpop.permute.xlu0 %629
        %631 = vrot.lane.b32.xlu0 %v615, 17
        %v632 = vpop.permute.xlu0 %631
        %633 = vrot.lane.b32.xlu0 %v616, 17
        %v634 = vpop.permute.xlu0 %633
        %vm635 = vcmask 138240
        %v636 = vsel %vm635, %v624, %v626
        %v637 = vsel %vm635, %v626, %v628
        %v638 = vsel %vm635, %v630, %v632
        %v639 = vsel %vm635, %v632, %v634
        %644 = vst [vmem:[#allocation3] sm:$0xff] %v636
        %645 = vst [vmem:[#allocation3 + $0x8] sm:$0xff] %v637
        %646 = vst [vmem:[#allocation3 + $0x10] sm:$0xff] %v638
        %647 = vst [vmem:[#allocation3 + $0x18] sm:$0xff] %v639
        %v648 = vld [vmem:[#allocation2] sm:$0xff]
        %v649 = vld [vmem:[#allocation2 + $0x8] sm:$0xff]
        %v650 = vld [vmem:[#allocation2 + $0x10] sm:$0xff]
        %v651 = vld [vmem:[#allocation2 + $0x20] sm:$0xff]
        %v652 = vld [vmem:[#allocation2 + $0x28] sm:$0xff]
        %v653 = vld [vmem:[#allocation2 + $0x30] sm:$0xff]
        %654 = vrot.lane.b32.xlu0 %v548, 127
        %v655 = vpop.permute.xlu0 %654
        %656 = vrot.lane.b32.xlu0 %v555, 127
        %v657 = vpop.permute.xlu0 %656
        %vm658 = vcmask 1039360
        %v659 = vsel %vm658, %v655, %v657
        %v663 = vmul.bf16 %v648, %v655
        %v664 = vmul.bf16 %v649, %v659
        %v665 = vmul.bf16 %v650, %v657
        %v666 = vmul.bf16 %v651, %v655
        %v667 = vmul.bf16 %v652, %v659
        %v668 = vmul.bf16 %v653, %v657
        %675 = vrot.lane.b32.xlu0 %v663, 1
        %v676 = vpop.permute.xlu0 %675
        %677 = vrot.lane.b32.xlu0 %v664, 1
        %v678 = vpop.permute.xlu0 %677
        %679 = vrot.lane.b32.xlu0 %v665, 1
        %v680 = vpop.permute.xlu0 %679
        %681 = vrot.lane.b32.xlu0 %v666, 1
        %v682 = vpop.permute.xlu0 %681
        %683 = vrot.lane.b32.xlu0 %v667, 1
        %v684 = vpop.permute.xlu0 %683
        %685 = vrot.lane.b32.xlu0 %v668, 1
        %v686 = vpop.permute.xlu0 %685
        %vm687 = vcmask 7168
        %v688 = vsel %vm687, %v676, %v678
        %v689 = vsel %vm687, %v678, %v680
        %v690 = vsel %vm687, %v682, %v684
        %v691 = vsel %vm687, %v684, %v686
        %696 = vst [vmem:[#allocation3 + $0x20] sm:$0xff] %v688
        %697 = vst [vmem:[#allocation3 + $0x28] sm:$0xff] %v689
        %698 = vst [vmem:[#allocation3 + $0x30] sm:$0xff] %v690
        %699 = vst [vmem:[#allocation3 + $0x38] sm:$0xff] %v691
        %v700 = vld [vmem:[#allocation2 + $0x8] sm:$0xff]
        %v701 = vld [vmem:[#allocation2 + $0x10] sm:$0xff]
        %v702 = vld [vmem:[#allocation2 + $0x18] sm:$0xff]
        %v703 = vld [vmem:[#allocation2 + $0x28] sm:$0xff]
        %v704 = vld [vmem:[#allocation2 + $0x30] sm:$0xff]
        %v705 = vld [vmem:[#allocation2 + $0x38] sm:$0xff]
        %706 = vrot.lane.b32.xlu0 %v548, 15
        %v707 = vpop.permute.xlu0 %706
        %708 = vrot.lane.b32.xlu0 %v555, 15
        %v709 = vpop.permute.xlu0 %708
        %vm710 = vcmask 121856
        %v711 = vsel %vm710, %v707, %v709
        %v715 = vmul.bf16 %v700, %v707
        %v716 = vmul.bf16 %v701, %v711
        %v717 = vmul.bf16 %v702, %v709
        %v718 = vmul.bf16 %v703, %v707
        %v719 = vmul.bf16 %v704, %v711
        %v720 = vmul.bf16 %v705, %v709
        %727 = vrot.lane.b32.xlu0 %v715, 113
        %v728 = vpop.permute.xlu0 %727
        %729 = vrot.lane.b32.xlu0 %v716, 113
        %v730 = vpop.permute.xlu0 %729
        %731 = vrot.lane.b32.xlu0 %v717, 113
        %v732 = vpop.permute.xlu0 %731
        %733 = vrot.lane.b32.xlu0 %v718, 113
        %v734 = vpop.permute.xlu0 %733
        %735 = vrot.lane.b32.xlu0 %v719, 113
        %v736 = vpop.permute.xlu0 %735
        %737 = vrot.lane.b32.xlu0 %v720, 113
        %v738 = vpop.permute.xlu0 %737
        %vm739 = vcmask 924672
        %v740 = vsel %vm739, %v728, %v730
        %v741 = vsel %vm739, %v730, %v732
        %v742 = vsel %vm739, %v734, %v736
        %v743 = vsel %vm739, %v736, %v738
        %748 = vst [vmem:[#allocation3 + $0x40] sm:$0xff] %v740
        %749 = vst [vmem:[#allocation3 + $0x48] sm:$0xff] %v741
        %750 = vst [vmem:[#allocation3 + $0x50] sm:$0xff] %v742
        %751 = vst [vmem:[#allocation3 + $0x58] sm:$0xff] %v743
        %v752 = vld [vmem:[#allocation2] sm:$0xff]
        %v753 = vld [vmem:[#allocation2 + $0x8] sm:$0xff]
        %v754 = vld [vmem:[#allocation2 + $0x10] sm:$0xff]
        %v755 = vld [vmem:[#allocation2 + $0x20] sm:$0xff]
        %v756 = vld [vmem:[#allocation2 + $0x28] sm:$0xff]
        %v757 = vld [vmem:[#allocation2 + $0x30] sm:$0xff]
        %764 = vrot.lane.b32.xlu0 %v752, 16
        %v765 = vpop.permute.xlu0 %764
        %766 = vrot.lane.b32.xlu0 %v753, 16
        %v767 = vpop.permute.xlu0 %766
        %768 = vrot.lane.b32.xlu0 %v754, 16
        %v769 = vpop.permute.xlu0 %768
        %770 = vrot.lane.b32.xlu0 %v755, 16
        %v771 = vpop.permute.xlu0 %770
        %772 = vrot.lane.b32.xlu0 %v756, 16
        %v773 = vpop.permute.xlu0 %772
        %774 = vrot.lane.b32.xlu0 %v757, 16
        %v775 = vpop.permute.xlu0 %774
        %vm776 = vcmask 130048
        %v777 = vsel %vm776, %v765, %v767
        %v778 = vsel %vm776, %v767, %v769
        %v779 = vsel %vm776, %v771, %v773
        %v780 = vsel %vm776, %v773, %v775
        %785 = vst [vmem:[#allocation3 + $0x60] sm:$0xff] %v777
        %786 = vst [vmem:[#allocation3 + $0x68] sm:$0xff] %v778
        %787 = vst [vmem:[#allocation3 + $0x70] sm:$0xff] %v779
        %788 = vst [vmem:[#allocation3 + $0x78] sm:$0xff] %v780
        %v789 = vld [vmem:[#allocation2 + $0x8] sm:$0xff]
        %v790 = vld [vmem:[#allocation2 + $0x10] sm:$0xff]
        %v791 = vld [vmem:[#allocation2 + $0x28] sm:$0xff]
        %v792 = vld [vmem:[#allocation2 + $0x30] sm:$0xff]
        %793 = vst [vmem:[#allocation3 + $0x80] sm:$0xff] %v789
        %794 = vst [vmem:[#allocation3 + $0x88] sm:$0xff] %v790
        %795 = vst [vmem:[#allocation3 + $0x90] sm:$0xff] %v791
        %796 = vst [vmem:[#allocation3 + $0x98] sm:$0xff] %v792
        %v797 = vld [vmem:[#allocation2 + $0x8] sm:$0xff]
        %v798 = vld [vmem:[#allocation2 + $0x10] sm:$0xff]
        %v799 = vld [vmem:[#allocation2 + $0x18] sm:$0xff]
        %v800 = vld [vmem:[#allocation2 + $0x28] sm:$0xff]
        %v801 = vld [vmem:[#allocation2 + $0x30] sm:$0xff]
        %v802 = vld [vmem:[#allocation2 + $0x38] sm:$0xff]
        %809 = vrot.lane.b32.xlu0 %v797, 112
        %v810 = vpop.permute.xlu0 %809
        %811 = vrot.lane.b32.xlu0 %v798, 112
        %v812 = vpop.permute.xlu0 %811
        %813 = vrot.lane.b32.xlu0 %v799, 112
        %v814 = vpop.permute.xlu0 %813
        %815 = vrot.lane.b32.xlu0 %v800, 112
        %v816 = vpop.permute.xlu0 %815
        %817 = vrot.lane.b32.xlu0 %v801, 112
        %v818 = vpop.permute.xlu0 %817
        %819 = vrot.lane.b32.xlu0 %v802, 112
        %v820 = vpop.permute.xlu0 %819
        %vm821 = vcmask 916480
        %v822 = vsel %vm821, %v810, %v812
        %v823 = vsel %vm821, %v812, %v814
        %v824 = vsel %vm821, %v816, %v818
        %v825 = vsel %vm821, %v818, %v820
        %830 = vst [vmem:[#allocation3 + $0xa0] sm:$0xff] %v822
        %831 = vst [vmem:[#allocation3 + $0xa8] sm:$0xff] %v823
        %832 = vst [vmem:[#allocation3 + $0xb0] sm:$0xff] %v824
        %833 = vst [vmem:[#allocation3 + $0xb8] sm:$0xff] %v825
        %v834 = vld [vmem:[#allocation2] sm:$0xff]
        %v835 = vld [vmem:[#allocation2 + $0x8] sm:$0xff]
        %v836 = vld [vmem:[#allocation2 + $0x10] sm:$0xff]
        %v837 = vld [vmem:[#allocation2 + $0x20] sm:$0xff]
        %v838 = vld [vmem:[#allocation2 + $0x28] sm:$0xff]
        %v839 = vld [vmem:[#allocation2 + $0x30] sm:$0xff]
        %842 = vrot.lane.b32.xlu0 %v586, 113
        %v843 = vpop.permute.xlu0 %842
        %844 = vrot.lane.b32.xlu0 %v593, 113
        %v845 = vpop.permute.xlu0 %844
        %v846 = vsel %vm739, %v843, %v845
        %v850 = vmul.bf16 %v834, %v843
        %v851 = vmul.bf16 %v835, %v846
        %v852 = vmul.bf16 %v836, %v845
        %v853 = vmul.bf16 %v837, %v843
        %v854 = vmul.bf16 %v838, %v846
        %v855 = vmul.bf16 %v839, %v845
        %862 = vrot.lane.b32.xlu0 %v850, 15
        %v863 = vpop.permute.xlu0 %862
        %864 = vrot.lane.b32.xlu0 %v851, 15
        %v865 = vpop.permute.xlu0 %864
        %866 = vrot.lane.b32.xlu0 %v852, 15
        %v867 = vpop.permute.xlu0 %866
        %868 = vrot.lane.b32.xlu0 %v853, 15
        %v869 = vpop.permute.xlu0 %868
        %870 = vrot.lane.b32.xlu0 %v854, 15
        %v871 = vpop.permute.xlu0 %870
        %872 = vrot.lane.b32.xlu0 %v855, 15
        %v873 = vpop.permute.xlu0 %872
        %v874 = vsel %vm710, %v863, %v865
        %v875 = vsel %vm710, %v865, %v867
        %v876 = vsel %vm710, %v869, %v871
        %v877 = vsel %vm710, %v871, %v873
        %882 = vst [vmem:[#allocation3 + $0xc0] sm:$0xff] %v874
        %883 = vst [vmem:[#allocation3 + $0xc8] sm:$0xff] %v875
        %884 = vst [vmem:[#allocation3 + $0xd0] sm:$0xff] %v876
        %885 = vst [vmem:[#allocation3 + $0xd8] sm:$0xff] %v877
        %v886 = vld [vmem:[#allocation2 + $0x8] sm:$0xff]
        %v887 = vld [vmem:[#allocation2 + $0x10] sm:$0xff]
        %v888 = vld [vmem:[#allocation2 + $0x18] sm:$0xff]
        %v889 = vld [vmem:[#allocation2 + $0x28] sm:$0xff]
        %v890 = vld [vmem:[#allocation2 + $0x30] sm:$0xff]
        %v891 = vld [vmem:[#allocation2 + $0x38] sm:$0xff]
        %892 = vrot.lane.b32.xlu0 %v586, 1
        %v893 = vpop.permute.xlu0 %892
        %894 = vrot.lane.b32.xlu0 %v593, 1
        %v895 = vpop.permute.xlu0 %894
        %v896 = vsel %vm687, %v893, %v895
        %v900 = vmul.bf16 %v886, %v893
        %v901 = vmul.bf16 %v887, %v896
        %v902 = vmul.bf16 %v888, %v895
        %v903 = vmul.bf16 %v889, %v893
        %v904 = vmul.bf16 %v890, %v896
        %v905 = vmul.bf16 %v891, %v895
        %912 = vrot.lane.b32.xlu0 %v900, 127
        %v913 = vpop.permute.xlu0 %912
        %914 = vrot.lane.b32.xlu0 %v901, 127
        %v915 = vpop.permute.xlu0 %914
        %916 = vrot.lane.b32.xlu0 %v902, 127
        %v917 = vpop.permute.xlu0 %916
        %918 = vrot.lane.b32.xlu0 %v903, 127
        %v919 = vpop.permute.xlu0 %918
        %920 = vrot.lane.b32.xlu0 %v904, 127
        %v921 = vpop.permute.xlu0 %920
        %922 = vrot.lane.b32.xlu0 %v905, 127
        %v923 = vpop.permute.xlu0 %922
        %v924 = vsel %vm658, %v913, %v915
        %v925 = vsel %vm658, %v915, %v917
        %v926 = vsel %vm658, %v919, %v921
        %v927 = vsel %vm658, %v921, %v923
        %932 = vst [vmem:[#allocation3 + $0xe0] sm:$0xff] %v924
        %933 = vst [vmem:[#allocation3 + $0xe8] sm:$0xff] %v925
        %934 = vst [vmem:[#allocation3 + $0xf0] sm:$0xff] %v926
        %935 = vst [vmem:[#allocation3 + $0xf8] sm:$0xff] %v927
        %v936 = vld [vmem:[#allocation2 + $0x8] sm:$0xff]
        %v937 = vld [vmem:[#allocation2 + $0x10] sm:$0xff]
        %v938 = vld [vmem:[#allocation2 + $0x18] sm:$0xff]
        %v939 = vld [vmem:[#allocation2 + $0x28] sm:$0xff]
        %v940 = vld [vmem:[#allocation2 + $0x30] sm:$0xff]
        %v941 = vld [vmem:[#allocation2 + $0x38] sm:$0xff]
        %942 = vrot.lane.b32.xlu0 %v586, 17
        %v943 = vpop.permute.xlu0 %942
        %944 = vrot.lane.b32.xlu0 %v593, 17
        %v945 = vpop.permute.xlu0 %944
        %v946 = vsel %vm635, %v943, %v945
        %v950 = vmul.bf16 %v936, %v943
        %v951 = vmul.bf16 %v937, %v946
        %v952 = vmul.bf16 %v938, %v945
        %v953 = vmul.bf16 %v939, %v943
        %v954 = vmul.bf16 %v940, %v946
        %v955 = vmul.bf16 %v941, %v945
        %962 = vrot.lane.b32.xlu0 %v950, 111
        %v963 = vpop.permute.xlu0 %962
        %964 = vrot.lane.b32.xlu0 %v951, 111
        %v965 = vpop.permute.xlu0 %964
        %966 = vrot.lane.b32.xlu0 %v952, 111
        %v967 = vpop.permute.xlu0 %966
        %968 = vrot.lane.b32.xlu0 %v953, 111
        %v969 = vpop.permute.xlu0 %968
        %970 = vrot.lane.b32.xlu0 %v954, 111
        %v971 = vpop.permute.xlu0 %970
        %972 = vrot.lane.b32.xlu0 %v955, 111
        %v973 = vpop.permute.xlu0 %972
        %v974 = vsel %vm606, %v963, %v965
        %v975 = vsel %vm606, %v965, %v967
        %v976 = vsel %vm606, %v969, %v971
        %v977 = vsel %vm606, %v971, %v973
        %982 = vst [vmem:[#allocation3 + $0x100] sm:$0xff] %v974
        %983 = vst [vmem:[#allocation3 + $0x108] sm:$0xff] %v975
        %984 = vst [vmem:[#allocation3 + $0x110] sm:$0xff] %v976
        %985 = vst [vmem:[#allocation3 + $0x118] sm:$0xff] %v977
        %v986 = vld [vmem:[%s3] sm:$0xff]
        %v987 = vld [vmem:[%s3 + $0x8] sm:$0xf]
        %v988 = vld [vmem:[%s3 + $0xc] sm:$0xff]
        %v989 = vld [vmem:[%s3 + $0x14] sm:$0xf]
        %v990 = vld [vmem:[#allocation3] sm:$0xff]
        %v991 = vld [vmem:[#allocation3 + $0x8] sm:$0xff]
        %v992 = vld [vmem:[#allocation3 + $0x10] sm:$0xff]
        %v993 = vld [vmem:[#allocation3 + $0x18] sm:$0xff]
        %v994 = vld [vmem:[#allocation3 + $0x20] sm:$0xff]
        %v995 = vld [vmem:[#allocation3 + $0x28] sm:$0xff]
        %v996 = vld [vmem:[#allocation3 + $0x30] sm:$0xff]
        %v997 = vld [vmem:[#allocation3 + $0x38] sm:$0xff]
        %v998 = vld [vmem:[#allocation3 + $0x40] sm:$0xff]
        %v999 = vld [vmem:[#allocation3 + $0x48] sm:$0xff]
        %v1000 = vld [vmem:[#allocation3 + $0x50] sm:$0xff]
        %v1001 = vld [vmem:[#allocation3 + $0x58] sm:$0xff]
        %v1002 = vld [vmem:[#allocation3 + $0x60] sm:$0xff]
        %v1003 = vld [vmem:[#allocation3 + $0x68] sm:$0xff]
        %v1004 = vld [vmem:[#allocation3 + $0x70] sm:$0xff]
        %v1005 = vld [vmem:[#allocation3 + $0x78] sm:$0xff]
        %v1006 = vld [vmem:[#allocation3 + $0x80] sm:$0xff]
        %v1007 = vld [vmem:[#allocation3 + $0x88] sm:$0xff]
        %v1008 = vld [vmem:[#allocation3 + $0x90] sm:$0xff]
        %v1009 = vld [vmem:[#allocation3 + $0x98] sm:$0xff]
        %v1010 = vld [vmem:[#allocation3 + $0xa0] sm:$0xff]
        %v1011 = vld [vmem:[#allocation3 + $0xa8] sm:$0xff]
        %v1012 = vld [vmem:[#allocation3 + $0xb0] sm:$0xff]
        %v1013 = vld [vmem:[#allocation3 + $0xb8] sm:$0xff]
        %v1014 = vld [vmem:[#allocation3 + $0xc0] sm:$0xff]
        %v1015 = vld [vmem:[#allocation3 + $0xc8] sm:$0xff]
        %v1016 = vld [vmem:[#allocation3 + $0xd0] sm:$0xff]
        %v1017 = vld [vmem:[#allocation3 + $0xd8] sm:$0xff]
        %v1018 = vld [vmem:[#allocation3 + $0xe0] sm:$0xff]
        %v1019 = vld [vmem:[#allocation3 + $0xe8] sm:$0xff]
        %v1020 = vld [vmem:[#allocation3 + $0xf0] sm:$0xff]
        %v1021 = vld [vmem:[#allocation3 + $0xf8] sm:$0xff]
        %v1022 = vld [vmem:[#allocation3 + $0x100] sm:$0xff]
        %v1023 = vld [vmem:[#allocation3 + $0x108] sm:$0xff]
        %v1024 = vld [vmem:[#allocation3 + $0x110] sm:$0xff]
        %v1025 = vld [vmem:[#allocation3 + $0x118] sm:$0xff]
        %v1026 = vld [vmem:[%s4] sm:$0xff]
        %v1027 = vld [vmem:[%s4 + $0x8] sm:$0xff]
        %1029 = vset.pattern.permute.xlu0 0
        %1030 = vperm.xlu0 %1029, %v1026
        %v1031 = vpop.permute.xlu0 %1030
        %1034 = vset.pattern.permute.xlu0 0
        %1035 = vperm.xlu0 %1034, %v1027
        %v1036 = vpop.permute.xlu0 %1035
        %v1042 = vunpack.c.l.b16 %v986
        %v1043 = vunpack.c.h.b16 %v986
        %v1044 = vunpack.c.l.b16 %v987
        %v1045 = vunpack.c.l.b16 %v988
        %v1046 = vunpack.c.h.b16 %v988
        %v1047 = vunpack.c.l.b16 %v989
        %v1048 = vpack.c.b16 %v1045, %v1042
        %v1049 = vpack.c.b16 %v1046, %v1043
        %v1050 = vpack.c.b16 %v1047, %v1044
        %vm1053 = vcmask 261120
        %v1055 = vsel %vm1053, %v1050, 0
        %1057 = vmatprep.subr.bf16.mxu0 %v991
        %1058 = vmatpush1.bf16.msra.mxu0 %v990
        %1059 = vmatprep.subr.bf16.mxu0 %v993
        %1060 = vmatpush1.bf16.msra.mxu0 %v992
        %1061 = vmatprep.subr.bf16.mxu0 %v995
        %1062 = vmatpush1.bf16.msra.mxu0 %v994
        %1063 = vmatprep.subr.bf16.mxu0 %v997
        %1064 = vmatpush1.bf16.msra.mxu0 %v996
        %1065 = vmatprep.subr.bf16.mxu0 %v999
        %1066 = vmatpush1.bf16.msra.mxu0 %v998
        %1067 = vmatprep.subr.bf16.mxu0 %v1001
        %1068 = vmatpush1.bf16.msra.mxu0 %v1000
        %1069 = vmatprep.subr.bf16.mxu0 %v1003
        %1070 = vmatpush1.bf16.msra.mxu0 %v1002
        %1071 = vmatprep.subr.bf16.mxu0 %v1005
        %1072 = vmatpush1.bf16.msra.mxu0 %v1004
        %1073 = vmatprep.subr.bf16.mxu0 %v1007
        %1074 = vmatpush1.bf16.msra.mxu0 %v1006
        %1075 = vmatprep.subr.bf16.mxu0 %v1009
        %1076 = vmatpush1.bf16.msra.mxu0 %v1008
        %1077 = vmatprep.subr.bf16.mxu0 %v1011
        %1078 = vmatpush1.bf16.msra.mxu0 %v1010
        %1079 = vmatprep.subr.bf16.mxu0 %v1013
        %1080 = vmatpush1.bf16.msra.mxu0 %v1012
        %1081 = vmatprep.subr.bf16.mxu0 %v1015
        %1082 = vmatpush1.bf16.msra.mxu0 %v1014
        %1083 = vmatprep.subr.bf16.mxu0 %v1017
        %1084 = vmatpush1.bf16.msra.mxu0 %v1016
        %1085 = vmatprep.subr.bf16.mxu0 %v1019
        %1086 = vmatpush1.bf16.msra.mxu0 %v1018
        %1087 = vmatprep.subr.bf16.mxu0 %v1021
        %1088 = vmatpush1.bf16.msra.mxu0 %v1020
        %1089 = vmatprep.mubr.bf16.mxu0 %v1049
        %1090 = vmatmul.mubr.bf16.gmra.mrb[0].mxu0 %v1048
        %v1091 = vpop.f32.mrb[0].mxu0
        %v1092 = vadd.f32 %v1031, %v1091
        %v1093 = vpop.f32.mrb[0].mxu0
        %v1094 = vadd.f32 %v1031, %v1093
        %v1095 = vpop.f32.mrb[0].mxu0
        %v1096 = vadd.f32 %v1036, %v1095
        %v1097 = vpop.f32.mrb[0].mxu0
        %v1098 = vadd.f32 %v1036, %v1097
        %1099 = vdwg.mxu0
        %1100 = vmatprep.subr.bf16.mxu0 %v1023
        %1101 = vmatpush1.bf16.msra.mxu0 %v1022
        %1102 = vmatprep.subr.bf16.mxu0 %v1025
        %1103 = vmatpush1.bf16.msra.mxu0 %v1024
        %1104 = vmatprep.subr.bf16.mxu0 0
        %1105 = vmatpush1.bf16.msra.mxu0 0
        %1106 = vmatprep.subr.bf16.mxu0 0
        %1107 = vmatpush1.bf16.msra.mxu0 0
        %1108 = vmatprep.subr.bf16.mxu0 0
        %1109 = vmatpush1.bf16.msra.mxu0 0
        %1110 = vmatprep.subr.bf16.mxu0 0
        %1111 = vmatpush1.bf16.msra.mxu0 0
        %1112 = vmatprep.subr.bf16.mxu0 0
        %1113 = vmatpush1.bf16.msra.mxu0 0
        %1114 = vmatprep.subr.bf16.mxu0 0
        %1115 = vmatpush1.bf16.msra.mxu0 0
        %1116 = vmatprep.subr.bf16.mxu0 0
        %1117 = vmatpush1.bf16.msra.mxu0 0
        %1118 = vmatprep.subr.bf16.mxu0 0
        %1119 = vmatpush1.bf16.msra.mxu0 0
        %1120 = vmatprep.subr.bf16.mxu0 0
        %1121 = vmatpush1.bf16.msra.mxu0 0
        %1122 = vmatprep.subr.bf16.mxu0 0
        %1123 = vmatpush1.bf16.msra.mxu0 0
        %1124 = vmatprep.subr.bf16.mxu0 0
        %1125 = vmatpush1.bf16.msra.mxu0 0
        %1126 = vmatprep.subr.bf16.mxu0 0
        %1127 = vmatpush1.bf16.msra.mxu0 0
        %1128 = vmatprep.subr.bf16.mxu0 0
        %1129 = vmatpush1.bf16.msra.mxu0 0
        %1130 = vmatprep.subr.bf16.mxu0 0
        %1131 = vmatpush1.bf16.msra.mxu0 0
        %1132 = vmatprep.mubr.bf16.mxu0 0
        %1133 = vmatmul.mubr.bf16.gmra.mrb[0].mxu0 %v1055
        %v1134 = vpop.f32.mrb[0].mxu0
        %v1135 = vadd.f32 %v1092, %v1134
        %v1136 = vpop.f32.mrb[0].mxu0
        %v1137 = vadd.f32 %v1094, %v1136
        %v1138 = vpop.f32.mrb[0].mxu0
        %v1139 = vadd.f32 %v1096, %v1138
        %v1140 = vpop.f32.mrb[0].mxu0
        %v1141 = vadd.f32 %v1098, %v1140
        %1142 = vdwg.mxu0
        %v1143 = vmax.f32 %v1135, 0.0
        %v1144 = vmax.f32 %v1137, 0.0
        %v1145 = vmax.f32 %v1139, 0.0
        %v1146 = vmax.f32 %v1141, 0.0
        %1147 = vst [vmem:[%s379 + $0x40] sm:$0xff] %v1143
        %1148 = vst [vmem:[%s379 + $0x48] sm:$0xff] %v1144
        %1149 = vst [vmem:[%s379 + $0x50] sm:$0xff] %v1145
        %1150 = vst [vmem:[%s379 + $0x58] sm:$0xff] %v1146
        %v1151 = vpack.c.bf16 %v1145, %v1143
        %v1152 = vpack.c.bf16 %v1146, %v1144
        %1153 = vst [vmem:[#allocation2 + $0x8] sm:$0xff] %v1151
        %1154 = vst [vmem:[#allocation2 + $0x10] sm:$0xff] %v1152
        %v1155 = vld [vmem:[%s9] sm:$0x3]
        %v1158 = vunpack.c.l.s4 1966171168
        %v1159 = vunpack.c.0.s8 %v1158
        %v1160 = vlaneseq
        %v1161 = vshrl.u32 %v1160, 7
        %v1162 = vsub.s32 %v1159, %v1161
        %v1163 = vrot.slane %v1155, %v1162
        %v1164 = vcombine.high %v1163, %v1163
        %v1166 = vunpack.c.l.s4 1966171168
        %v1167 = vunpack.c.0.s8 %v1166
        %v1168 = vlaneseq
        %v1169 = vshrl.u32 %v1168, 7
        %v1170 = vsub.s32 %v1167, %v1169
        %v1171 = vrot.slane %v1163, %v1170
        %v1173 = vunpack.c.l.s4 1966171168
        %v1174 = vunpack.c.0.s8 %v1173
        %v1175 = vlaneseq
        %v1176 = vshrl.u32 %v1175, 7
        %v1177 = vsub.s32 %v1174, %v1176
        %v1178 = vrot.slane %v1164, %v1177
        %v1180 = vpack.i.b16 %v1171, %v1171
        %v1182 = vlaneseq
        %v1183 = vshrl.u32 %v1182, 7
        %v1184 = vsub.s32 0, %v1183
        %v1185 = vrot.slane %v1180, %v1184
        %v1187 = vpack.i.b16 %v1178, %v1178
        %v1189 = vlaneseq
        %v1190 = vshrl.u32 %v1189, 7
        %v1191 = vsub.s32 0, %v1190
        %v1192 = vrot.slane %v1187, %v1191
        %v1193 = vld [vmem:[%s10] sm:$0x3]
        %v1196 = vunpack.c.l.s4 1966171168
        %v1197 = vunpack.c.0.s8 %v1196
        %v1198 = vlaneseq
        %v1199 = vshrl.u32 %v1198, 7
        %v1200 = vsub.s32 %v1197, %v1199
        %v1201 = vrot.slane %v1193, %v1200
        %v1202 = vcombine.high %v1201, %v1201
        %v1204 = vunpack.c.l.s4 1966171168
        %v1205 = vunpack.c.0.s8 %v1204
        %v1206 = vlaneseq
        %v1207 = vshrl.u32 %v1206, 7
        %v1208 = vsub.s32 %v1205, %v1207
        %v1209 = vrot.slane %v1201, %v1208
        %v1211 = vunpack.c.l.s4 1966171168
        %v1212 = vunpack.c.0.s8 %v1211
        %v1213 = vlaneseq
        %v1214 = vshrl.u32 %v1213, 7
        %v1215 = vsub.s32 %v1212, %v1214
        %v1216 = vrot.slane %v1202, %v1215
        %v1218 = vpack.i.b16 %v1209, %v1209
        %v1220 = vlaneseq
        %v1221 = vshrl.u32 %v1220, 7
        %v1222 = vsub.s32 0, %v1221
        %v1223 = vrot.slane %v1218, %v1222
        %v1225 = vpack.i.b16 %v1216, %v1216
        %v1227 = vlaneseq
        %v1228 = vshrl.u32 %v1227, 7
        %v1229 = vsub.s32 0, %v1228
        %v1230 = vrot.slane %v1225, %v1229
        %v1231 = vld [vmem:[#allocation2] sm:$0xff]
        %v1232 = vld [vmem:[#allocation2 + $0x8] sm:$0xff]
        %v1233 = vld [vmem:[#allocation2 + $0x10] sm:$0xff]
        %1236 = vrot.lane.b32.xlu0 %v1185, 111
        %v1237 = vpop.permute.xlu0 %1236
        %1238 = vrot.lane.b32.xlu0 %v1192, 111
        %v1239 = vpop.permute.xlu0 %1238
        %v1240 = vsel %vm606, %v1237, %v1239
        %v1244 = vmul.bf16 %v1231, %v1237
        %v1245 = vmul.bf16 %v1232, %v1240
        %v1246 = vmul.bf16 %v1233, %v1239
        %1250 = vrot.lane.b32.xlu0 %v1244, 17
        %v1251 = vpop.permute.xlu0 %1250
        %1252 = vrot.lane.b32.xlu0 %v1245, 17
        %v1253 = vpop.permute.xlu0 %1252
        %1254 = vrot.lane.b32.xlu0 %v1246, 17
        %v1255 = vpop.permute.xlu0 %1254
        %v1256 = vsel %vm635, %v1251, %v1253
        %v1257 = vsel %vm635, %v1253, %v1255
        %1260 = vst [vmem:[#allocation3] sm:$0xff] %v1256
        %1261 = vst [vmem:[#allocation3 + $0x8] sm:$0xff] %v1257
        %v1262 = vld [vmem:[#allocation2] sm:$0xff]
        %v1263 = vld [vmem:[#allocation2 + $0x8] sm:$0xff]
        %v1264 = vld [vmem:[#allocation2 + $0x10] sm:$0xff]
        %1265 = vrot.lane.b32.xlu0 %v1185, 127
        %v1266 = vpop.permute.xlu0 %1265
        %1267 = vrot.lane.b32.xlu0 %v1192, 127
        %v1268 = vpop.permute.xlu0 %1267
        %v1269 = vsel %vm658, %v1266, %v1268
        %v1273 = vmul.bf16 %v1262, %v1266
        %v1274 = vmul.bf16 %v1263, %v1269
        %v1275 = vmul.bf16 %v1264, %v1268
        %1279 = vrot.lane.b32.xlu0 %v1273, 1
        %v1280 = vpop.permute.xlu0 %1279
        %1281 = vrot.lane.b32.xlu0 %v1274, 1
        %v1282 = vpop.permute.xlu0 %1281
        %1283 = vrot.lane.b32.xlu0 %v1275, 1
        %v1284 = vpop.permute.xlu0 %1283
        %v1285 = vsel %vm687, %v1280, %v1282
        %v1286 = vsel %vm687, %v1282, %v1284
        %1289 = vst [vmem:[#allocation3 + $0x10] sm:$0xff] %v1285
        %1290 = vst [vmem:[#allocation3 + $0x18] sm:$0xff] %v1286
        %v1291 = vld [vmem:[#allocation2 + $0x8] sm:$0xff]
        %v1292 = vld [vmem:[#allocation2 + $0x10] sm:$0xff]
        %v1293 = vld [vmem:[#allocation2 + $0x18] sm:$0xff]
        %1294 = vrot.lane.b32.xlu0 %v1185, 15
        %v1295 = vpop.permute.xlu0 %1294
        %1296 = vrot.lane.b32.xlu0 %v1192, 15
        %v1297 = vpop.permute.xlu0 %1296
        %v1298 = vsel %vm710, %v1295, %v1297
        %v1302 = vmul.bf16 %v1291, %v1295
        %v1303 = vmul.bf16 %v1292, %v1298
        %v1304 = vmul.bf16 %v1293, %v1297
        %1308 = vrot.lane.b32.xlu0 %v1302, 113
        %v1309 = vpop.permute.xlu0 %1308
        %1310 = vrot.lane.b32.xlu0 %v1303, 113
        %v1311 = vpop.permute.xlu0 %1310
        %1312 = vrot.lane.b32.xlu0 %v1304, 113
        %v1313 = vpop.permute.xlu0 %1312
        %v1314 = vsel %vm739, %v1309, %v1311
        %v1315 = vsel %vm739, %v1311, %v1313
        %1318 = vst [vmem:[#allocation3 + $0x20] sm:$0xff] %v1314
        %1319 = vst [vmem:[#allocation3 + $0x28] sm:$0xff] %v1315
        %v1320 = vld [vmem:[#allocation2] sm:$0xff]
        %v1321 = vld [vmem:[#allocation2 + $0x8] sm:$0xff]
        %v1322 = vld [vmem:[#allocation2 + $0x10] sm:$0xff]
        %1326 = vrot.lane.b32.xlu0 %v1320, 16
        %v1327 = vpop.permute.xlu0 %1326
        %1328 = vrot.lane.b32.xlu0 %v1321, 16
        %v1329 = vpop.permute.xlu0 %1328
        %1330 = vrot.lane.b32.xlu0 %v1322, 16
        %v1331 = vpop.permute.xlu0 %1330
        %v1332 = vsel %vm776, %v1327, %v1329
        %v1333 = vsel %vm776, %v1329, %v1331
        %1336 = vst [vmem:[#allocation3 + $0x30] sm:$0xff] %v1332
        %1337 = vst [vmem:[#allocation3 + $0x38] sm:$0xff] %v1333
        %v1338 = vld [vmem:[#allocation2 + $0x8] sm:$0xff]
        %v1339 = vld [vmem:[#allocation2 + $0x10] sm:$0xff]
        %1340 = vst [vmem:[#allocation3 + $0x40] sm:$0xff] %v1338
        %1341 = vst [vmem:[#allocation3 + $0x48] sm:$0xff] %v1339
        %v1342 = vld [vmem:[#allocation2 + $0x8] sm:$0xff]
        %v1343 = vld [vmem:[#allocation2 + $0x10] sm:$0xff]
        %v1344 = vld [vmem:[#allocation2 + $0x18] sm:$0xff]
        %1348 = vrot.lane.b32.xlu0 %v1342, 112
        %v1349 = vpop.permute.xlu0 %1348
        %1350 = vrot.lane.b32.xlu0 %v1343, 112
        %v1351 = vpop.permute.xlu0 %1350
        %1352 = vrot.lane.b32.xlu0 %v1344, 112
        %v1353 = vpop.permute.xlu0 %1352
        %v1354 = vsel %vm821, %v1349, %v1351
        %v1355 = vsel %vm821, %v1351, %v1353
        %1358 = vst [vmem:[#allocation3 + $0x50] sm:$0xff] %v1354
        %1359 = vst [vmem:[#allocation3 + $0x58] sm:$0xff] %v1355
        %v1360 = vld [vmem:[#allocation2] sm:$0xff]
        %v1361 = vld [vmem:[#allocation2 + $0x8] sm:$0xff]
        %v1362 = vld [vmem:[#allocation2 + $0x10] sm:$0xff]
        %1365 = vrot.lane.b32.xlu0 %v1223, 113
        %v1366 = vpop.permute.xlu0 %1365
        %1367 = vrot.lane.b32.xlu0 %v1230, 113
        %v1368 = vpop.permute.xlu0 %1367
        %v1369 = vsel %vm739, %v1366, %v1368
        %v1373 = vmul.bf16 %v1360, %v1366
        %v1374 = vmul.bf16 %v1361, %v1369
        %v1375 = vmul.bf16 %v1362, %v1368
        %1379 = vrot.lane.b32.xlu0 %v1373, 15
        %v1380 = vpop.permute.xlu0 %1379
        %1381 = vrot.lane.b32.xlu0 %v1374, 15
        %v1382 = vpop.permute.xlu0 %1381
        %1383 = vrot.lane.b32.xlu0 %v1375, 15
        %v1384 = vpop.permute.xlu0 %1383
        %v1385 = vsel %vm710, %v1380, %v1382
        %v1386 = vsel %vm710, %v1382, %v1384
        %1389 = vst [vmem:[#allocation3 + $0x60] sm:$0xff] %v1385
        %1390 = vst [vmem:[#allocation3 + $0x68] sm:$0xff] %v1386
        %v1391 = vld [vmem:[#allocation2 + $0x8] sm:$0xff]
        %v1392 = vld [vmem:[#allocation2 + $0x10] sm:$0xff]
        %v1393 = vld [vmem:[#allocation2 + $0x18] sm:$0xff]
        %1394 = vrot.lane.b32.xlu0 %v1223, 1
        %v1395 = vpop.permute.xlu0 %1394
        %1396 = vrot.lane.b32.xlu0 %v1230, 1
        %v1397 = vpop.permute.xlu0 %1396
        %v1398 = vsel %vm687, %v1395, %v1397
        %v1402 = vmul.bf16 %v1391, %v1395
        %v1403 = vmul.bf16 %v1392, %v1398
        %v1404 = vmul.bf16 %v1393, %v1397
        %1408 = vrot.lane.b32.xlu0 %v1402, 127
        %v1409 = vpop.permute.xlu0 %1408
        %1410 = vrot.lane.b32.xlu0 %v1403, 127
        %v1411 = vpop.permute.xlu0 %1410
        %1412 = vrot.lane.b32.xlu0 %v1404, 127
        %v1413 = vpop.permute.xlu0 %1412
        %v1414 = vsel %vm658, %v1409, %v1411
        %v1415 = vsel %vm658, %v1411, %v1413
        %1418 = vst [vmem:[#allocation3 + $0x70] sm:$0xff] %v1414
        %1419 = vst [vmem:[#allocation3 + $0x78] sm:$0xff] %v1415
        %v1420 = vld [vmem:[#allocation2 + $0x8] sm:$0xff]
        %v1421 = vld [vmem:[#allocation2 + $0x10] sm:$0xff]
        %v1422 = vld [vmem:[#allocation2 + $0x18] sm:$0xff]
        %1423 = vrot.lane.b32.xlu0 %v1223, 17
        %v1424 = vpop.permute.xlu0 %1423
        %1425 = vrot.lane.b32.xlu0 %v1230, 17
        %v1426 = vpop.permute.xlu0 %1425
        %v1427 = vsel %vm635, %v1424, %v1426
        %v1431 = vmul.bf16 %v1420, %v1424
        %v1432 = vmul.bf16 %v1421, %v1427
        %v1433 = vmul.bf16 %v1422, %v1426
        %1437 = vrot.lane.b32.xlu0 %v1431, 111
        %v1438 = vpop.permute.xlu0 %1437
        %1439 = vrot.lane.b32.xlu0 %v1432, 111
        %v1440 = vpop.permute.xlu0 %1439
        %1441 = vrot.lane.b32.xlu0 %v1433, 111
        %v1442 = vpop.permute.xlu0 %1441
        %v1443 = vsel %vm606, %v1438, %v1440
        %v1444 = vsel %vm606, %v1440, %v1442
        %1447 = vst [vmem:[#allocation3 + $0x80] sm:$0xff] %v1443
        %1448 = vst [vmem:[#allocation3 + $0x88] sm:$0xff] %v1444
        %v1449 = vld [vmem:[%s5] sm:$0xff]
        %v1450 = vld [vmem:[#allocation3] sm:$0xff]
        %v1451 = vld [vmem:[#allocation3 + $0x8] sm:$0xff]
        %v1452 = vld [vmem:[#allocation3 + $0x10] sm:$0xff]
        %v1453 = vld [vmem:[#allocation3 + $0x18] sm:$0xff]
        %v1454 = vld [vmem:[#allocation3 + $0x20] sm:$0xff]
        %v1455 = vld [vmem:[#allocation3 + $0x28] sm:$0xff]
        %v1456 = vld [vmem:[#allocation3 + $0x30] sm:$0xff]
        %v1457 = vld [vmem:[#allocation3 + $0x38] sm:$0xff]
        %v1458 = vld [vmem:[#allocation3 + $0x40] sm:$0xff]
        %v1459 = vld [vmem:[#allocation3 + $0x48] sm:$0xff]
        %v1460 = vld [vmem:[#allocation3 + $0x50] sm:$0xff]
        %v1461 = vld [vmem:[#allocation3 + $0x58] sm:$0xff]
        %v1462 = vld [vmem:[#allocation3 + $0x60] sm:$0xff]
        %v1463 = vld [vmem:[#allocation3 + $0x68] sm:$0xff]
        %v1464 = vld [vmem:[#allocation3 + $0x70] sm:$0xff]
        %v1465 = vld [vmem:[#allocation3 + $0x78] sm:$0xff]
        %v1466 = vld [vmem:[#allocation3 + $0x80] sm:$0xff]
        %v1467 = vld [vmem:[#allocation3 + $0x88] sm:$0xff]
        %v1468 = vld [vmem:[%s6] sm:$0xff]
        %1470 = vset.pattern.permute.xlu0 0
        %1471 = vperm.xlu0 %1470, %v1468
        %v1472 = vpop.permute.xlu0 %1471
        %v1475 = vunpack.c.l.b16 %v1449
        %v1476 = vunpack.c.h.b16 %v1449
        %v1477 = vpack.c.b16 %v1475, %v1475
        %v1478 = vpack.c.b16 %v1476, %v1476
        %v1481 = vsel %vm434, %v1478, 0
        %1483 = vmatprep.subr.bf16.mxu0 %v1451
        %1484 = vmatpush1.bf16.msra.mxu0 %v1450
        %1485 = vmatprep.subr.bf16.mxu0 %v1453
        %1486 = vmatpush1.bf16.msra.mxu0 %v1452
        %1487 = vmatprep.subr.bf16.mxu0 %v1455
        %1488 = vmatpush1.bf16.msra.mxu0 %v1454
        %1489 = vmatprep.subr.bf16.mxu0 %v1457
        %1490 = vmatpush1.bf16.msra.mxu0 %v1456
        %1491 = vmatprep.subr.bf16.mxu0 %v1459
        %1492 = vmatpush1.bf16.msra.mxu0 %v1458
        %1493 = vmatprep.subr.bf16.mxu0 %v1461
        %1494 = vmatpush1.bf16.msra.mxu0 %v1460
        %1495 = vmatprep.subr.bf16.mxu0 %v1463
        %1496 = vmatpush1.bf16.msra.mxu0 %v1462
        %1497 = vmatprep.subr.bf16.mxu0 %v1465
        %1498 = vmatpush1.bf16.msra.mxu0 %v1464
        %1499 = vmatprep.subr.bf16.mxu0 %v1467
        %1500 = vmatpush1.bf16.msra.mxu0 %v1466
        %1501 = vmatprep.subr.bf16.mxu0 0
        %1502 = vmatpush1.bf16.msra.mxu0 0
        %1503 = vmatprep.subr.bf16.mxu0 0
        %1504 = vmatpush1.bf16.msra.mxu0 0
        %1505 = vmatprep.subr.bf16.mxu0 0
        %1506 = vmatpush1.bf16.msra.mxu0 0
        %1507 = vmatprep.subr.bf16.mxu0 0
        %1508 = vmatpush1.bf16.msra.mxu0 0
        %1509 = vmatprep.subr.bf16.mxu0 0
        %1510 = vmatpush1.bf16.msra.mxu0 0
        %1511 = vmatprep.subr.bf16.mxu0 0
        %1512 = vmatpush1.bf16.msra.mxu0 0
        %1513 = vmatprep.subr.bf16.mxu0 0
        %1514 = vmatpush1.bf16.msra.mxu0 0
        %1515 = vmatprep.mubr.bf16.mxu0 %v1481
        %1516 = vmatmul.mubr.bf16.gmra.mrb[0].mxu0 %v1477
        %v1517 = vpop.f32.mrb[0].mxu0
        %v1518 = vadd.f32 %v1472, %v1517
        %v1519 = vpop.f32.mrb[0].mxu0
        %v1520 = vadd.f32 %v1472, %v1519
        %v1521 = vpop.f32.mrb[0].mxu0
        %v1522 = vpop.f32.mrb[0].mxu0
        %1523 = vdwg.mxu0
        %v1524 = vmax.f32 %v1518, 0.0
        %v1525 = vmax.f32 %v1520, 0.0
        %1526 = vst [vmem:[%s379 + $0x60] sm:$0xff] %v1524
        %1527 = vst [vmem:[%s379 + $0x68] sm:$0xff] %v1525
        %v1528 = vpack.c.bf16 %v1524, %v1524
        %v1529 = vpack.c.bf16 %v1525, %v1525
        %1530 = vst [vmem:[#allocation2 + $0x8] sm:$0xf] %v1528
        %1531 = vst [vmem:[#allocation2 + $0x10] sm:$0xf] %v1529
        %v1532 = vld [vmem:[%s9] sm:$0x3]
        %v1535 = vunpack.c.l.s4 1966171168
        %v1536 = vunpack.c.0.s8 %v1535
        %v1537 = vlaneseq
        %v1538 = vshrl.u32 %v1537, 7
        %v1539 = vsub.s32 %v1536, %v1538
        %v1540 = vrot.slane %v1532, %v1539
        %v1541 = vcombine.high %v1540, %v1540
        %v1543 = vunpack.c.l.s4 1966171168
        %v1544 = vunpack.c.0.s8 %v1543
        %v1545 = vlaneseq
        %v1546 = vshrl.u32 %v1545, 7
        %v1547 = vsub.s32 %v1544, %v1546
        %v1548 = vrot.slane %v1540, %v1547
        %v1550 = vunpack.c.l.s4 1966171168
        %v1551 = vunpack.c.0.s8 %v1550
        %v1552 = vlaneseq
        %v1553 = vshrl.u32 %v1552, 7
        %v1554 = vsub.s32 %v1551, %v1553
        %v1555 = vrot.slane %v1541, %v1554
        %v1557 = vpack.i.b16 %v1548, %v1548
        %v1559 = vlaneseq
        %v1560 = vshrl.u32 %v1559, 7
        %v1561 = vsub.s32 0, %v1560
        %v1562 = vrot.slane %v1557, %v1561
        %v1564 = vpack.i.b16 %v1555, %v1555
        %v1566 = vlaneseq
        %v1567 = vshrl.u32 %v1566, 7
        %v1568 = vsub.s32 0, %v1567
        %v1569 = vrot.slane %v1564, %v1568
        %v1570 = vld [vmem:[%s10] sm:$0x3]
        %v1573 = vunpack.c.l.s4 1966171168
        %v1574 = vunpack.c.0.s8 %v1573
        %v1575 = vlaneseq
        %v1576 = vshrl.u32 %v1575, 7
        %v1577 = vsub.s32 %v1574, %v1576
        %v1578 = vrot.slane %v1570, %v1577
        %v1579 = vcombine.high %v1578, %v1578
        %v1581 = vunpack.c.l.s4 1966171168
        %v1582 = vunpack.c.0.s8 %v1581
        %v1583 = vlaneseq
        %v1584 = vshrl.u32 %v1583, 7
        %v1585 = vsub.s32 %v1582, %v1584
        %v1586 = vrot.slane %v1578, %v1585
        %v1588 = vunpack.c.l.s4 1966171168
        %v1589 = vunpack.c.0.s8 %v1588
        %v1590 = vlaneseq
        %v1591 = vshrl.u32 %v1590, 7
        %v1592 = vsub.s32 %v1589, %v1591
        %v1593 = vrot.slane %v1579, %v1592
        %v1595 = vpack.i.b16 %v1586, %v1586
        %v1597 = vlaneseq
        %v1598 = vshrl.u32 %v1597, 7
        %v1599 = vsub.s32 0, %v1598
        %v1600 = vrot.slane %v1595, %v1599
        %v1602 = vpack.i.b16 %v1593, %v1593
        %v1604 = vlaneseq
        %v1605 = vshrl.u32 %v1604, 7
        %v1606 = vsub.s32 0, %v1605
        %v1607 = vrot.slane %v1602, %v1606
        %v1608 = vld [vmem:[#allocation2] sm:$0xf]
        %v1609 = vld [vmem:[#allocation2 + $0x8] sm:$0xf]
        %v1610 = vld [vmem:[#allocation2 + $0x10] sm:$0xf]
        %1613 = vrot.lane.b32.xlu0 %v1562, 111
        %v1614 = vpop.permute.xlu0 %1613
        %1615 = vrot.lane.b32.xlu0 %v1569, 111
        %v1616 = vpop.permute.xlu0 %1615
        %v1617 = vsel %vm606, %v1614, %v1616
        %v1621 = vmul.bf16 %v1608, %v1614
        %v1622 = vmul.bf16 %v1609, %v1617
        %v1623 = vmul.bf16 %v1610, %v1616
        %1627 = vrot.lane.b32.xlu0 %v1621, 17
        %v1628 = vpop.permute.xlu0 %1627
        %1629 = vrot.lane.b32.xlu0 %v1622, 17
        %v1630 = vpop.permute.xlu0 %1629
        %1631 = vrot.lane.b32.xlu0 %v1623, 17
        %v1632 = vpop.permute.xlu0 %1631
        %v1633 = vsel %vm635, %v1628, %v1630
        %v1634 = vsel %vm635, %v1630, %v1632
        %1637 = vst [vmem:[#allocation3] sm:$0xf] %v1633
        %1638 = vst [vmem:[#allocation3 + $0x8] sm:$0xf] %v1634
        %v1639 = vld [vmem:[#allocation2] sm:$0xf]
        %v1640 = vld [vmem:[#allocation2 + $0x8] sm:$0xf]
        %v1641 = vld [vmem:[#allocation2 + $0x10] sm:$0xf]
        %1642 = vrot.lane.b32.xlu0 %v1562, 127
        %v1643 = vpop.permute.xlu0 %1642
        %1644 = vrot.lane.b32.xlu0 %v1569, 127
        %v1645 = vpop.permute.xlu0 %1644
        %v1646 = vsel %vm658, %v1643, %v1645
        %v1650 = vmul.bf16 %v1639, %v1643
        %v1651 = vmul.bf16 %v1640, %v1646
        %v1652 = vmul.bf16 %v1641, %v1645
        %v1656 = vrot.slane %v1650, 4
        %v1657 = vrot.slane %v1651, 4
        %v1658 = vrot.slane %v1652, 4
        %1659 = vrot.lane.b32.xlu0 %v1656, 1
        %v1660 = vpop.permute.xlu0 %1659
        %1661 = vrot.lane.b32.xlu0 %v1657, 1
        %v1662 = vpop.permute.xlu0 %1661
        %1663 = vrot.lane.b32.xlu0 %v1658, 1
        %v1664 = vpop.permute.xlu0 %1663
        %v1665 = vsel %vm687, %v1660, %v1662
        %v1666 = vsel %vm687, %v1662, %v1664
        %1669 = vst [vmem:[#allocation3] sm:$0xf0] %v1665
        %1670 = vst [vmem:[#allocation3 + $0x8] sm:$0xf0] %v1666
        %v1671 = vld [vmem:[#allocation2 + $0x8] sm:$0xf]
        %v1672 = vld [vmem:[#allocation2 + $0x10] sm:$0xf]
        %v1673 = vld [vmem:[#allocation2 + $0x18] sm:$0xf]
        %1674 = vrot.lane.b32.xlu0 %v1562, 15
        %v1675 = vpop.permute.xlu0 %1674
        %1676 = vrot.lane.b32.xlu0 %v1569, 15
        %v1677 = vpop.permute.xlu0 %1676
        %v1678 = vsel %vm710, %v1675, %v1677
        %v1682 = vmul.bf16 %v1671, %v1675
        %v1683 = vmul.bf16 %v1672, %v1678
        %v1684 = vmul.bf16 %v1673, %v1677
        %1688 = vrot.lane.b32.xlu0 %v1682, 113
        %v1689 = vpop.permute.xlu0 %1688
        %1690 = vrot.lane.b32.xlu0 %v1683, 113
        %v1691 = vpop.permute.xlu0 %1690
        %1692 = vrot.lane.b32.xlu0 %v1684, 113
        %v1693 = vpop.permute.xlu0 %1692
        %v1694 = vsel %vm739, %v1689, %v1691
        %v1695 = vsel %vm739, %v1691, %v1693
        %1698 = vst [vmem:[#allocation3 + $0x10] sm:$0xf] %v1694
        %1699 = vst [vmem:[#allocation3 + $0x18] sm:$0xf] %v1695
        %v1700 = vld [vmem:[#allocation2] sm:$0xf]
        %v1701 = vld [vmem:[#allocation2 + $0x8] sm:$0xf]
        %v1702 = vld [vmem:[#allocation2 + $0x10] sm:$0xf]
        %v1706 = vrot.slane %v1700, 4
        %v1707 = vrot.slane %v1701, 4
        %v1708 = vrot.slane %v1702, 4
        %1709 = vrot.lane.b32.xlu0 %v1706, 16
        %v1710 = vpop.permute.xlu0 %1709
        %1711 = vrot.lane.b32.xlu0 %v1707, 16
        %v1712 = vpop.permute.xlu0 %1711
        %1713 = vrot.lane.b32.xlu0 %v1708, 16
        %v1714 = vpop.permute.xlu0 %1713
        %v1715 = vsel %vm776, %v1710, %v1712
        %v1716 = vsel %vm776, %v1712, %v1714
        %1719 = vst [vmem:[#allocation3 + $0x10] sm:$0xf0] %v1715
        %1720 = vst [vmem:[#allocation3 + $0x18] sm:$0xf0] %v1716
        %v1721 = vld [vmem:[#allocation2 + $0x8] sm:$0xf]
        %v1722 = vld [vmem:[#allocation2 + $0x10] sm:$0xf]
        %1723 = vst [vmem:[#allocation3 + $0x20] sm:$0xf] %v1721
        %1724 = vst [vmem:[#allocation3 + $0x28] sm:$0xf] %v1722
        %v1725 = vld [vmem:[#allocation2 + $0x8] sm:$0xf]
        %v1726 = vld [vmem:[#allocation2 + $0x10] sm:$0xf]
        %v1727 = vld [vmem:[#allocation2 + $0x18] sm:$0xf]
        %v1731 = vrot.slane %v1725, 4
        %v1732 = vrot.slane %v1726, 4
        %v1733 = vrot.slane %v1727, 4
        %1734 = vrot.lane.b32.xlu0 %v1731, 112
        %v1735 = vpop.permute.xlu0 %1734
        %1736 = vrot.lane.b32.xlu0 %v1732, 112
        %v1737 = vpop.permute.xlu0 %1736
        %1738 = vrot.lane.b32.xlu0 %v1733, 112
        %v1739 = vpop.permute.xlu0 %1738
        %v1740 = vsel %vm821, %v1735, %v1737
        %v1741 = vsel %vm821, %v1737, %v1739
        %1744 = vst [vmem:[#allocation3 + $0x20] sm:$0xf0] %v1740
        %1745 = vst [vmem:[#allocation3 + $0x28] sm:$0xf0] %v1741
        %v1746 = vld [vmem:[#allocation2] sm:$0xf]
        %v1747 = vld [vmem:[#allocation2 + $0x8] sm:$0xf]
        %v1748 = vld [vmem:[#allocation2 + $0x10] sm:$0xf]
        %1751 = vrot.lane.b32.xlu0 %v1600, 113
        %v1752 = vpop.permute.xlu0 %1751
        %1753 = vrot.lane.b32.xlu0 %v1607, 113
        %v1754 = vpop.permute.xlu0 %1753
        %v1755 = vsel %vm739, %v1752, %v1754
        %v1759 = vmul.bf16 %v1746, %v1752
        %v1760 = vmul.bf16 %v1747, %v1755
        %v1761 = vmul.bf16 %v1748, %v1754
        %1765 = vrot.lane.b32.xlu0 %v1759, 15
        %v1766 = vpop.permute.xlu0 %1765
        %1767 = vrot.lane.b32.xlu0 %v1760, 15
        %v1768 = vpop.permute.xlu0 %1767
        %1769 = vrot.lane.b32.xlu0 %v1761, 15
        %v1770 = vpop.permute.xlu0 %1769
        %v1771 = vsel %vm710, %v1766, %v1768
        %v1772 = vsel %vm710, %v1768, %v1770
        %1775 = vst [vmem:[#allocation3 + $0x30] sm:$0xf] %v1771
        %1776 = vst [vmem:[#allocation3 + $0x38] sm:$0xf] %v1772
        %v1777 = vld [vmem:[#allocation2 + $0x8] sm:$0xf]
        %v1778 = vld [vmem:[#allocation2 + $0x10] sm:$0xf]
        %v1779 = vld [vmem:[#allocation2 + $0x18] sm:$0xf]
        %1780 = vrot.lane.b32.xlu0 %v1600, 1
        %v1781 = vpop.permute.xlu0 %1780
        %1782 = vrot.lane.b32.xlu0 %v1607, 1
        %v1783 = vpop.permute.xlu0 %1782
        %v1784 = vsel %vm687, %v1781, %v1783
        %v1788 = vmul.bf16 %v1777, %v1781
        %v1789 = vmul.bf16 %v1778, %v1784
        %v1790 = vmul.bf16 %v1779, %v1783
        %v1794 = vrot.slane %v1788, 4
        %v1795 = vrot.slane %v1789, 4
        %v1796 = vrot.slane %v1790, 4
        %1797 = vrot.lane.b32.xlu0 %v1794, 127
        %v1798 = vpop.permute.xlu0 %1797
        %1799 = vrot.lane.b32.xlu0 %v1795, 127
        %v1800 = vpop.permute.xlu0 %1799
        %1801 = vrot.lane.b32.xlu0 %v1796, 127
        %v1802 = vpop.permute.xlu0 %1801
        %v1803 = vsel %vm658, %v1798, %v1800
        %v1804 = vsel %vm658, %v1800, %v1802
        %1807 = vst [vmem:[#allocation3 + $0x30] sm:$0xf0] %v1803
        %1808 = vst [vmem:[#allocation3 + $0x38] sm:$0xf0] %v1804
        %v1809 = vld [vmem:[#allocation2 + $0x8] sm:$0xf]
        %v1810 = vld [vmem:[#allocation2 + $0x10] sm:$0xf]
        %v1811 = vld [vmem:[#allocation2 + $0x18] sm:$0xf]
        %1812 = vrot.lane.b32.xlu0 %v1600, 17
        %v1813 = vpop.permute.xlu0 %1812
        %1814 = vrot.lane.b32.xlu0 %v1607, 17
        %v1815 = vpop.permute.xlu0 %1814
        %v1816 = vsel %vm635, %v1813, %v1815
        %v1820 = vmul.bf16 %v1809, %v1813
        %v1821 = vmul.bf16 %v1810, %v1816
        %v1822 = vmul.bf16 %v1811, %v1815
        %1826 = vrot.lane.b32.xlu0 %v1820, 111
        %v1827 = vpop.permute.xlu0 %1826
        %1828 = vrot.lane.b32.xlu0 %v1821, 111
        %v1829 = vpop.permute.xlu0 %1828
        %1830 = vrot.lane.b32.xlu0 %v1822, 111
        %v1831 = vpop.permute.xlu0 %1830
        %v1832 = vsel %vm606, %v1827, %v1829
        %v1833 = vsel %vm606, %v1829, %v1831
        %1836 = vst [vmem:[#allocation3 + $0x40] sm:$0xf] %v1832
        %1837 = vst [vmem:[#allocation3 + $0x48] sm:$0xf] %v1833
        %v1838 = vld [vmem:[%s7] sm:$0xf]
        %v1839 = vld [vmem:[#allocation3] sm:$0xff]
        %v1840 = vld [vmem:[#allocation3 + $0x8] sm:$0xff]
        %v1841 = vld [vmem:[#allocation3 + $0x10] sm:$0xff]
        %v1842 = vld [vmem:[#allocation3 + $0x18] sm:$0xff]
        %v1843 = vld [vmem:[#allocation3 + $0x20] sm:$0xff]
        %v1844 = vld [vmem:[#allocation3 + $0x28] sm:$0xff]
        %v1845 = vld [vmem:[#allocation3 + $0x30] sm:$0xff]
        %v1846 = vld [vmem:[#allocation3 + $0x38] sm:$0xff]
        %v1847 = vld [vmem:[#allocation3 + $0x40] sm:$0xf]
        %v1848 = vld [vmem:[#allocation3 + $0x48] sm:$0xf]
        %v1849 = vld [vmem:[%s8] sm:$0xff]
        %1851 = vset.pattern.permute.xlu0 0
        %1852 = vperm.xlu0 %1851, %v1849
        %v1853 = vpop.permute.xlu0 %1852
        %vm1855 = vcmask 588800
        %v1857 = vsel %vm1855, %v1838, 0
        %vm1859 = vcmask 1043456
        %v1861 = vsel %vm1859, %v1847, 0
        %v1864 = vsel %vm1859, %v1848, 0
        %1866 = vmatprep.subr.bf16.mxu0 %v1840
        %1867 = vmatpush1.bf16.msra.mxu0 %v1839
        %1868 = vmatprep.subr.bf16.mxu0 %v1842
        %1869 = vmatpush1.bf16.msra.mxu0 %v1841
        %1870 = vmatprep.subr.bf16.mxu0 %v1844
        %1871 = vmatpush1.bf16.msra.mxu0 %v1843
        %1872 = vmatprep.subr.bf16.mxu0 %v1846
        %1873 = vmatpush1.bf16.msra.mxu0 %v1845
        %1874 = vmatprep.subr.bf16.mxu0 %v1864
        %1875 = vmatpush1.bf16.msra.mxu0 %v1861
        %1876 = vmatprep.subr.bf16.mxu0 0
        %1877 = vmatpush1.bf16.msra.mxu0 0
        %1878 = vmatprep.subr.bf16.mxu0 0
        %1879 = vmatpush1.bf16.msra.mxu0 0
        %1880 = vmatprep.subr.bf16.mxu0 0
        %1881 = vmatpush1.bf16.msra.mxu0 0
        %1882 = vmatprep.subr.bf16.mxu0 0
        %1883 = vmatpush1.bf16.msra.mxu0 0
        %1884 = vmatprep.subr.bf16.mxu0 0
        %1885 = vmatpush1.bf16.msra.mxu0 0
        %1886 = vmatprep.subr.bf16.mxu0 0
        %1887 = vmatpush1.bf16.msra.mxu0 0
        %1888 = vmatprep.subr.bf16.mxu0 0
        %1889 = vmatpush1.bf16.msra.mxu0 0
        %1890 = vmatprep.subr.bf16.mxu0 0
        %1891 = vmatpush1.bf16.msra.mxu0 0
        %1892 = vmatprep.subr.bf16.mxu0 0
        %1893 = vmatpush1.bf16.msra.mxu0 0
        %1894 = vmatprep.subr.bf16.mxu0 0
        %1895 = vmatpush1.bf16.msra.mxu0 0
        %1896 = vmatprep.subr.bf16.mxu0 0
        %1897 = vmatpush1.bf16.msra.mxu0 0
        %1898 = vmatprep.mubr.bf16.mxu0 0
        %1899 = vmatmul.mubr.bf16.gmra.mrb[0].mxu0 %v1857
        %v1900 = vpop.f32.mrb[0].mxu0
        %v1901 = vadd.f32 %v1853, %v1900
        %v1902 = vpop.f32.mrb[0].mxu0
        %v1903 = vadd.f32 %v1853, %v1902
        %v1904 = vpop.f32.mrb[0].mxu0
        %v1905 = vpop.f32.mrb[0].mxu0
        %1906 = vdwg.mxu0
        %v1907 = vmax.f32 %v1901, 0.0
        %v1908 = vmax.f32 %v1903, 0.0
        %1909 = vst [vmem:[%s379 + $0x70] sm:$0xff] %v1907
        %1910 = vst [vmem:[%s379 + $0x78] sm:$0xff] %v1908
        %s1911 = sand.u32 %s269, 1
        %s1912 = scalar_lea.sflag [#allocation5], %s1911
        %s1913 = sand.u32 %s269, 1
        %s1914 = smul.addr %s1913, 128
        %s1915 = scalar_lea.vmem [#allocation4], %s1914
        // Predicated region
        $region65: #{tpu_custom_call.1} parent=63 // pred_check
          %p1916 = pneg %p279
        $region66: #{tpu_custom_call.1} parent=63 // pred_check_branch
          %1918 = sbr.rel (%p1916) target = $region68
        $region67: #{tpu_custom_call.1} parent=63 // pred_region
          %s1920 = ssub.s32 2048, 2048
          %1921 = vsyncadd %s1912, %s1920
          %s1922 = smul.addr %s25, 16
          %s1923 = smul.addr %s1922, 128
          %s1924 = scalar_lea.hbm %s11, %s1923
          %s1925 = sshll.u32 %s1915, 4
          %s1926 = int_to_ptr.vmem [resolvable:$true] %s1925
          %1931 = dma.vmem_to_hbm [thread:$0]  %s1926, 2048, %s1924, %s1912, 256, 256, 16
        $region68: #{tpu_custom_call.1} parent=63 // pred_fallthru
          _
      $region64: #{tpu_custom_call.1} parent=5 // pred_fallthru
        _
      %p1932 = scmp.le.s32.totalorder 2, %s20
      // Predicated region
      $region69: #{tpu_custom_call.1} parent=5 // pred_check
        %p1933 = pneg %p1932
      $region70: #{tpu_custom_call.1} parent=5 // pred_check_branch
        %1935 = sbr.rel (%p1933) target = $region72
      $region71: #{tpu_custom_call.1} parent=5 // pred_region
        %s1936 = ssub.s32 %s20, 2
        // Predicated region
        $region73: #{tpu_custom_call.1} parent=71 // pred_check
          %p1937 = pneg %p285
        $region74: #{tpu_custom_call.1} parent=71 // pred_check_branch
          %1939 = sbr.rel (%p1937) target = $region76
        $region75: #{tpu_custom_call.1} parent=71 // pred_region
          %s1940 = sand.u32 %s270, 1
          %s1941 = scalar_lea.sflag [#allocation5], %s1940
          %s1942 = sand.u32 %s270, 1
          %s1943 = smul.addr %s1942, 128
          %s1944 = scalar_lea.vmem [#allocation4], %s1943
          %1945 = dma.done %s1941, 2048
        $region76: #{tpu_custom_call.1} parent=71 // pred_fallthru
          _
      $region72: #{tpu_custom_call.1} parent=5 // pred_fallthru
        _
    $region6: #{tpu_custom_call.1} parent=1 // loop_footer
      %s24 = sadd.s32 1, %s20
    $region7: #{tpu_custom_call.1} parent=1 // loop_footer_branch
      %19 = sbr.rel target = $region3
    $region8: #{tpu_custom_call.1} parent=1 // loop_exit
      _
    %1946 = vsyncpa [#allocation5], 1
    %s1947 = scalar_lea.sflag [#allocation5], 1
    %1948 = vsyncpa %s1947, 1

</llo_original>
